<compile_context>
chip_gen: v6e
topology: v6e:2x2x1
jax: 0.10.0
libtpu: 0.0.40
codegen_flags: <defaults>
</compile_context>

<pallas_src>
import functools

import jax
import jax.numpy as jnp
from jax.experimental import pallas as pl
from jax.experimental.pallas import tpu as pltpu


def _round_up(v, m):
    return (v + m - 1) // m * m


def _mlp_kernel(x_ref, w1_ref, b1_ref, w2_ref, b2_ref, o_ref, *, sub):
    # x_ref : [n, TB, 128]  VMEM   (batch folded onto sublane x lane axes)
    # w1_ref: [H, n] SMEM   b1_ref: [H] SMEM   w2_ref: [M, H] SMEM   b2_ref: [M] SMEM
    # o_ref : [M, TB, 128]  VMEM
    n, tb, _ = x_ref.shape
    H = w1_ref.shape[0]
    M = w2_ref.shape[0]

    # Hoist the grid-invariant scalar weights out of the inner loop.
    w1s = [[w1_ref[j, k] for k in range(n)] for j in range(H)]
    b1s = [b1_ref[j] for j in range(H)]
    w2s = [[w2_ref[i, j] for j in range(H)] for i in range(M)]
    b2s = [b2_ref[i] for i in range(M)]

    n_steps = tb // sub  # wrapper guarantees sub | tb

    # Walk the VMEM-resident block in `sub`-row chunks so every intermediate
    # stays in vregs (no VMEM spill traffic): per chunk only n loads + M stores.
    @pl.loop(0, n_steps)
    def _(s):
        r0 = pl.multiple_of(s * sub, sub)
        xs = [x_ref[k, pl.ds(r0, sub), :] for k in range(n)]      # n x [sub,128]
        ys = [None] * M
        for j in range(H):
            # fc1 row j (bias folded into the first term), scalar * full vreg.
            h = xs[0] * w1s[j][0] + b1s[j]
            for k in range(1, n):
                h = h + xs[k] * w1s[j][k]
            h = jnp.maximum(h, 0.0)                                # ReLU
            # fc2: accumulate hidden unit j into the M output rows.
            for i in range(M):
                if j == 0:
                    ys[i] = h * w2s[i][0] + b2s[i]
                else:
                    ys[i] = ys[i] + h * w2s[i][j]
        for i in range(M):
            o_ref[i, pl.ds(r0, sub), :] = ys[i]                    # dense store


def mlp_forward(x, w1, b1, w2, b2, *, block_rows=2048, min_tiles=2):
    """relu(x @ w1.T + b1) @ w2.T + b2 with PyTorch-layout ([out,in]) weights.

    x: [B, n] f32; w1: [H, n]; b1: [H]; w2: [M, H]; b2: [M].  Returns [B, M] f32.
    `block_rows` = 128-sample rows per grid tile (each row = 128 batch elements).
    """
    x = jnp.asarray(x, jnp.float32)
    B, n = x.shape
    H, M = w1.shape[0], w2.shape[0]

    # ---- lane/sublane-dense layout ---------------------------------------
    # Pad B to a multiple of 128 lanes (<=127 rows, fused by XLA with the
    # transpose below -> x is copied at most once), then view the batch as
    # 128-sample rows: x3[f, r, c] = x[r*128 + c, f].  The reshape is free.
    Bp = _round_up(B, 128)
    if Bp != B:
        x = jnp.pad(x, ((0, Bp - B), (0, 0)))
    Bs = Bp // 128
    x3 = x.T.reshape(n, Bs, 128)

    # ---- batch tiling ------------------------------------------------------
    # Large tiles amortize per-grid-step overhead; keep >= min_tiles tiles so
    # the "parallel" batch axis can split across both v7x TensorCores.
    tb = min(block_rows, _round_up(max(1, pl.cdiv(Bs, min_tiles)), 32))
    if tb > Bs:
        tb = Bs
    sub = next(c for c in (32, 16, 8, tb) if tb % c == 0)   # inner vreg chunk
    grid = (pl.cdiv(Bs, tb),)   # boundary block is clipped/masked by Pallas

    kernel = functools.partial(_mlp_kernel, sub=sub)

    y3 = pl.pallas_call(
        kernel,
        out_shape=jax.ShapeDtypeStruct((M, Bs, 128), jnp.float32),
        grid_spec=pltpu.PrefetchScalarGridSpec(
            num_scalar_prefetch=0,
            grid=grid,
            in_specs=[
                # Activations: tiled over the batch-row axis, auto double-buffered.
                pl.BlockSpec((n, tb, 128), lambda i: (0, i, 0)),
                # Tiny weights / biases: whole arrays in SMEM, read as scalars.
                pl.BlockSpec(memory_space=pltpu.MemorySpace.SMEM),
                pl.BlockSpec(memory_space=pltpu.MemorySpace.SMEM),
                pl.BlockSpec(memory_space=pltpu.MemorySpace.SMEM),
                pl.BlockSpec(memory_space=pltpu.MemorySpace.SMEM),
            ],
            out_specs=pl.BlockSpec((M, tb, 128), lambda i: (0, i, 0)),
        ),
        compiler_params=pltpu.CompilerParams(
            dimension_semantics=("parallel",),      # independent batch tiles
            vmem_limit_bytes=32 * 1024 * 1024,      # safe on v7x's 64 MiB VMEM
        ),
        cost_estimate=pl.CostEstimate(
            flops=2 * Bp * (n * H + H * M),
            transcendentals=0,
            bytes_accessed=(n + M) * Bp * 4,
        ),
    )(x3, w1, b1, w2, b2)

    # [M, Bs, 128] -> [M, Bp] (free reshape) -> drop pad, un-transpose to [B, M].
    return y3.reshape(M, Bp)[:, :B].T


def init_params(key, n, hidden, m):
    """Deterministic init mimicking torch.nn.Linear (uniform +-1/sqrt(fan_in)),
    stored in PyTorch's [out_features, in_features] layout."""
    k1, k2, k3, k4 = jax.random.split(key, 4)
    lim1 = 1.0 / jnp.sqrt(jnp.float32(n))
    lim2 = 1.0 / jnp.sqrt(jnp.float32(hidden))
    w1 = jax.random.uniform(k1, (hidden, n), jnp.float32, -lim1, lim1)
    b1 = jax.random.uniform(k2, (hidden,), jnp.float32, -lim1, lim1)
    w2 = jax.random.uniform(k3, (m, hidden), jnp.float32, -lim2, lim2)
    b2 = jax.random.uniform(k4, (m,), jnp.float32, -lim2, lim2)
    return w1, b1, w2, b2


if __name__ == "__main__":
    # CartPole-v0: n = 4 observations, hidden = 8, m = 2 actions.
    # B = 8300 -> padded to 8320 (65 rows of 128); tile = 64 rows -> 2-tile grid
    # with a masked partial boundary block and a 2-step inner chunk loop.
    B, n_obs, hidden, m_act = 8300, 4, 8, 2

    key = jax.random.PRNGKey(0)
    kx, kp = jax.random.split(key)
    x = jax.random.normal(kx, (B, n_obs), jnp.float32)
    w1, b1, w2, b2 = init_params(kp, n_obs, hidden, m_act)

    out = mlp_forward(x, w1, b1, w2, b2)
    out = jax.block_until_ready(out)

    # Reference in plain JAX (same math as the PyTorch forward, [out,in] weights).
    ref = jnp.maximum(x @ w1.T + b1, 0.0) @ w2.T + b2
    assert out.shape == (B, m_act)
    assert jnp.allclose(out, ref, atol=1e-5, rtol=1e-5)

    print("KERNEL_OK")
</pallas_src>

<mosaic_0001>
module attributes {stable_mosaic.version = 11 : i64} {
  func.func @_mlp_kernel(%arg0: i32, %arg1: memref<4x64x128xf32, #tpu.memory_space<vmem>>, %arg2: memref<8x4xf32, #tpu.memory_space<smem>>, %arg3: memref<8xf32, #tpu.memory_space<smem>>, %arg4: memref<2x8xf32, #tpu.memory_space<smem>>, %arg5: memref<2xf32, #tpu.memory_space<smem>>, %arg6: memref<2x64x128xf32, #tpu.memory_space<vmem>>) attributes {dimension_semantics = [#tpu.dimension_semantics<parallel>], iteration_bounds = array<i64: 2>, scalar_prefetch = 0 : i64, scratch_operands = 0 : i64, tpu.core_type = #tpu.core_type<tc>, window_params = [{transform_indices = @transform_0, window_bounds = array<i64: 4, 64, 128>}, {transform_indices = @transform_1, window_bounds = array<i64: 8, 4>}, {transform_indices = @transform_2, window_bounds = array<i64: 8>}, {transform_indices = @transform_3, window_bounds = array<i64: 2, 8>}, {transform_indices = @transform_4, window_bounds = array<i64: 2>}, {transform_indices = @transform_5, window_bounds = array<i64: 2, 64, 128>}]} {
    %c0 = arith.constant 0 : index
    %c0_0 = arith.constant 0 : index
    %0 = memref.load %arg2[%c0, %c0_0] : memref<8x4xf32, #tpu.memory_space<smem>>
    %c0_1 = arith.constant 0 : index
    %c1 = arith.constant 1 : index
    %1 = memref.load %arg2[%c0_1, %c1] : memref<8x4xf32, #tpu.memory_space<smem>>
    %c0_2 = arith.constant 0 : index
    %c2 = arith.constant 2 : index
    %2 = memref.load %arg2[%c0_2, %c2] : memref<8x4xf32, #tpu.memory_space<smem>>
    %c0_3 = arith.constant 0 : index
    %c3 = arith.constant 3 : index
    %3 = memref.load %arg2[%c0_3, %c3] : memref<8x4xf32, #tpu.memory_space<smem>>
    %c1_4 = arith.constant 1 : index
    %c0_5 = arith.constant 0 : index
    %4 = memref.load %arg2[%c1_4, %c0_5] : memref<8x4xf32, #tpu.memory_space<smem>>
    %c1_6 = arith.constant 1 : index
    %c1_7 = arith.constant 1 : index
    %5 = memref.load %arg2[%c1_6, %c1_7] : memref<8x4xf32, #tpu.memory_space<smem>>
    %c1_8 = arith.constant 1 : index
    %c2_9 = arith.constant 2 : index
    %6 = memref.load %arg2[%c1_8, %c2_9] : memref<8x4xf32, #tpu.memory_space<smem>>
    %c1_10 = arith.constant 1 : index
    %c3_11 = arith.constant 3 : index
    %7 = memref.load %arg2[%c1_10, %c3_11] : memref<8x4xf32, #tpu.memory_space<smem>>
    %c2_12 = arith.constant 2 : index
    %c0_13 = arith.constant 0 : index
    %8 = memref.load %arg2[%c2_12, %c0_13] : memref<8x4xf32, #tpu.memory_space<smem>>
    %c2_14 = arith.constant 2 : index
    %c1_15 = arith.constant 1 : index
    %9 = memref.load %arg2[%c2_14, %c1_15] : memref<8x4xf32, #tpu.memory_space<smem>>
    %c2_16 = arith.constant 2 : index
    %c2_17 = arith.constant 2 : index
    %10 = memref.load %arg2[%c2_16, %c2_17] : memref<8x4xf32, #tpu.memory_space<smem>>
    %c2_18 = arith.constant 2 : index
    %c3_19 = arith.constant 3 : index
    %11 = memref.load %arg2[%c2_18, %c3_19] : memref<8x4xf32, #tpu.memory_space<smem>>
    %c3_20 = arith.constant 3 : index
    %c0_21 = arith.constant 0 : index
    %12 = memref.load %arg2[%c3_20, %c0_21] : memref<8x4xf32, #tpu.memory_space<smem>>
    %c3_22 = arith.constant 3 : index
    %c1_23 = arith.constant 1 : index
    %13 = memref.load %arg2[%c3_22, %c1_23] : memref<8x4xf32, #tpu.memory_space<smem>>
    %c3_24 = arith.constant 3 : index
    %c2_25 = arith.constant 2 : index
    %14 = memref.load %arg2[%c3_24, %c2_25] : memref<8x4xf32, #tpu.memory_space<smem>>
    %c3_26 = arith.constant 3 : index
    %c3_27 = arith.constant 3 : index
    %15 = memref.load %arg2[%c3_26, %c3_27] : memref<8x4xf32, #tpu.memory_space<smem>>
    %c4 = arith.constant 4 : index
    %c0_28 = arith.constant 0 : index
    %16 = memref.load %arg2[%c4, %c0_28] : memref<8x4xf32, #tpu.memory_space<smem>>
    %c4_29 = arith.constant 4 : index
    %c1_30 = arith.constant 1 : index
    %17 = memref.load %arg2[%c4_29, %c1_30] : memref<8x4xf32, #tpu.memory_space<smem>>
    %c4_31 = arith.constant 4 : index
    %c2_32 = arith.constant 2 : index
    %18 = memref.load %arg2[%c4_31, %c2_32] : memref<8x4xf32, #tpu.memory_space<smem>>
    %c4_33 = arith.constant 4 : index
    %c3_34 = arith.constant 3 : index
    %19 = memref.load %arg2[%c4_33, %c3_34] : memref<8x4xf32, #tpu.memory_space<smem>>
    %c5 = arith.constant 5 : index
    %c0_35 = arith.constant 0 : index
    %20 = memref.load %arg2[%c5, %c0_35] : memref<8x4xf32, #tpu.memory_space<smem>>
    %c5_36 = arith.constant 5 : index
    %c1_37 = arith.constant 1 : index
    %21 = memref.load %arg2[%c5_36, %c1_37] : memref<8x4xf32, #tpu.memory_space<smem>>
    %c5_38 = arith.constant 5 : index
    %c2_39 = arith.constant 2 : index
    %22 = memref.load %arg2[%c5_38, %c2_39] : memref<8x4xf32, #tpu.memory_space<smem>>
    %c5_40 = arith.constant 5 : index
    %c3_41 = arith.constant 3 : index
    %23 = memref.load %arg2[%c5_40, %c3_41] : memref<8x4xf32, #tpu.memory_space<smem>>
    %c6 = arith.constant 6 : index
    %c0_42 = arith.constant 0 : index
    %24 = memref.load %arg2[%c6, %c0_42] : memref<8x4xf32, #tpu.memory_space<smem>>
    %c6_43 = arith.constant 6 : index
    %c1_44 = arith.constant 1 : index
    %25 = memref.load %arg2[%c6_43, %c1_44] : memref<8x4xf32, #tpu.memory_space<smem>>
    %c6_45 = arith.constant 6 : index
    %c2_46 = arith.constant 2 : index
    %26 = memref.load %arg2[%c6_45, %c2_46] : memref<8x4xf32, #tpu.memory_space<smem>>
    %c6_47 = arith.constant 6 : index
    %c3_48 = arith.constant 3 : index
    %27 = memref.load %arg2[%c6_47, %c3_48] : memref<8x4xf32, #tpu.memory_space<smem>>
    %c7 = arith.constant 7 : index
    %c0_49 = arith.constant 0 : index
    %28 = memref.load %arg2[%c7, %c0_49] : memref<8x4xf32, #tpu.memory_space<smem>>
    %c7_50 = arith.constant 7 : index
    %c1_51 = arith.constant 1 : index
    %29 = memref.load %arg2[%c7_50, %c1_51] : memref<8x4xf32, #tpu.memory_space<smem>>
    %c7_52 = arith.constant 7 : index
    %c2_53 = arith.constant 2 : index
    %30 = memref.load %arg2[%c7_52, %c2_53] : memref<8x4xf32, #tpu.memory_space<smem>>
    %c7_54 = arith.constant 7 : index
    %c3_55 = arith.constant 3 : index
    %31 = memref.load %arg2[%c7_54, %c3_55] : memref<8x4xf32, #tpu.memory_space<smem>>
    %c0_56 = arith.constant 0 : index
    %32 = memref.load %arg3[%c0_56] : memref<8xf32, #tpu.memory_space<smem>>
    %c1_57 = arith.constant 1 : index
    %33 = memref.load %arg3[%c1_57] : memref<8xf32, #tpu.memory_space<smem>>
    %c2_58 = arith.constant 2 : index
    %34 = memref.load %arg3[%c2_58] : memref<8xf32, #tpu.memory_space<smem>>
    %c3_59 = arith.constant 3 : index
    %35 = memref.load %arg3[%c3_59] : memref<8xf32, #tpu.memory_space<smem>>
    %c4_60 = arith.constant 4 : index
    %36 = memref.load %arg3[%c4_60] : memref<8xf32, #tpu.memory_space<smem>>
    %c5_61 = arith.constant 5 : index
    %37 = memref.load %arg3[%c5_61] : memref<8xf32, #tpu.memory_space<smem>>
    %c6_62 = arith.constant 6 : index
    %38 = memref.load %arg3[%c6_62] : memref<8xf32, #tpu.memory_space<smem>>
    %c7_63 = arith.constant 7 : index
    %39 = memref.load %arg3[%c7_63] : memref<8xf32, #tpu.memory_space<smem>>
    %c0_64 = arith.constant 0 : index
    %c0_65 = arith.constant 0 : index
    %40 = memref.load %arg4[%c0_64, %c0_65] : memref<2x8xf32, #tpu.memory_space<smem>>
    %c0_66 = arith.constant 0 : index
    %c1_67 = arith.constant 1 : index
    %41 = memref.load %arg4[%c0_66, %c1_67] : memref<2x8xf32, #tpu.memory_space<smem>>
    %c0_68 = arith.constant 0 : index
    %c2_69 = arith.constant 2 : index
    %42 = memref.load %arg4[%c0_68, %c2_69] : memref<2x8xf32, #tpu.memory_space<smem>>
    %c0_70 = arith.constant 0 : index
    %c3_71 = arith.constant 3 : index
    %43 = memref.load %arg4[%c0_70, %c3_71] : memref<2x8xf32, #tpu.memory_space<smem>>
    %c0_72 = arith.constant 0 : index
    %c4_73 = arith.constant 4 : index
    %44 = memref.load %arg4[%c0_72, %c4_73] : memref<2x8xf32, #tpu.memory_space<smem>>
    %c0_74 = arith.constant 0 : index
    %c5_75 = arith.constant 5 : index
    %45 = memref.load %arg4[%c0_74, %c5_75] : memref<2x8xf32, #tpu.memory_space<smem>>
    %c0_76 = arith.constant 0 : index
    %c6_77 = arith.constant 6 : index
    %46 = memref.load %arg4[%c0_76, %c6_77] : memref<2x8xf32, #tpu.memory_space<smem>>
    %c0_78 = arith.constant 0 : index
    %c7_79 = arith.constant 7 : index
    %47 = memref.load %arg4[%c0_78, %c7_79] : memref<2x8xf32, #tpu.memory_space<smem>>
    %c1_80 = arith.constant 1 : index
    %c0_81 = arith.constant 0 : index
    %48 = memref.load %arg4[%c1_80, %c0_81] : memref<2x8xf32, #tpu.memory_space<smem>>
    %c1_82 = arith.constant 1 : index
    %c1_83 = arith.constant 1 : index
    %49 = memref.load %arg4[%c1_82, %c1_83] : memref<2x8xf32, #tpu.memory_space<smem>>
    %c1_84 = arith.constant 1 : index
    %c2_85 = arith.constant 2 : index
    %50 = memref.load %arg4[%c1_84, %c2_85] : memref<2x8xf32, #tpu.memory_space<smem>>
    %c1_86 = arith.constant 1 : index
    %c3_87 = arith.constant 3 : index
    %51 = memref.load %arg4[%c1_86, %c3_87] : memref<2x8xf32, #tpu.memory_space<smem>>
    %c1_88 = arith.constant 1 : index
    %c4_89 = arith.constant 4 : index
    %52 = memref.load %arg4[%c1_88, %c4_89] : memref<2x8xf32, #tpu.memory_space<smem>>
    %c1_90 = arith.constant 1 : index
    %c5_91 = arith.constant 5 : index
    %53 = memref.load %arg4[%c1_90, %c5_91] : memref<2x8xf32, #tpu.memory_space<smem>>
    %c1_92 = arith.constant 1 : index
    %c6_93 = arith.constant 6 : index
    %54 = memref.load %arg4[%c1_92, %c6_93] : memref<2x8xf32, #tpu.memory_space<smem>>
    %c1_94 = arith.constant 1 : index
    %c7_95 = arith.constant 7 : index
    %55 = memref.load %arg4[%c1_94, %c7_95] : memref<2x8xf32, #tpu.memory_space<smem>>
    %c0_96 = arith.constant 0 : index
    %56 = memref.load %arg5[%c0_96] : memref<2xf32, #tpu.memory_space<smem>>
    %c1_97 = arith.constant 1 : index
    %57 = memref.load %arg5[%c1_97] : memref<2xf32, #tpu.memory_space<smem>>
    %c0_i32 = arith.constant 0 : i32
    %c2_i32 = arith.constant 2 : i32
    %58 = arith.addi %c0_i32, %c2_i32 : i32
    %c1_i32 = arith.constant 1 : i32
    scf.for %arg7 = %c0_i32 to %58 step %c1_i32  : i32 {
      %c1_i32_99 = arith.constant 1 : i32
      %59 = arith.muli %arg7, %c1_i32_99 : i32
      %c0_i32_100 = arith.constant 0 : i32
      %60 = arith.addi %c0_i32_100, %59 : i32
      %c32_i32 = arith.constant 32 : i32
      %61 = arith.muli %60, %c32_i32 : i32
      %62 = tpu.assume_multiple %61, 32 : i32
      %c0_101 = arith.constant 0 : index
      %63 = arith.index_cast %62 : i32 to index
      %c0_102 = arith.constant 0 : index
      %64 = vector.load %arg1[%c0_101, %63, %c0_102] : memref<4x64x128xf32, #tpu.memory_space<vmem>>, vector<1x32x128xf32>
      %65 = vector.shape_cast %64 : vector<1x32x128xf32> to vector<32x128xf32>
      %c1_103 = arith.constant 1 : index
      %66 = arith.index_cast %62 : i32 to index
      %c0_104 = arith.constant 0 : index
      %67 = vector.load %arg1[%c1_103, %66, %c0_104] : memref<4x64x128xf32, #tpu.memory_space<vmem>>, vector<1x32x128xf32>
      %68 = vector.shape_cast %67 : vector<1x32x128xf32> to vector<32x128xf32>
      %c2_105 = arith.constant 2 : index
      %69 = arith.index_cast %62 : i32 to index
      %c0_106 = arith.constant 0 : index
      %70 = vector.load %arg1[%c2_105, %69, %c0_106] : memref<4x64x128xf32, #tpu.memory_space<vmem>>, vector<1x32x128xf32>
      %71 = vector.shape_cast %70 : vector<1x32x128xf32> to vector<32x128xf32>
      %c3_107 = arith.constant 3 : index
      %72 = arith.index_cast %62 : i32 to index
      %c0_108 = arith.constant 0 : index
      %73 = vector.load %arg1[%c3_107, %72, %c0_108] : memref<4x64x128xf32, #tpu.memory_space<vmem>>, vector<1x32x128xf32>
      %74 = vector.shape_cast %73 : vector<1x32x128xf32> to vector<32x128xf32>
      %75 = vector.broadcast %0 : f32 to vector<32x128xf32>
      %76 = arith.mulf %65, %75 : vector<32x128xf32>
      %77 = vector.broadcast %32 : f32 to vector<32x128xf32>
      %78 = arith.addf %76, %77 : vector<32x128xf32>
      %79 = vector.broadcast %1 : f32 to vector<32x128xf32>
      %80 = arith.mulf %68, %79 : vector<32x128xf32>
      %81 = arith.addf %78, %80 : vector<32x128xf32>
      %82 = vector.broadcast %2 : f32 to vector<32x128xf32>
      %83 = arith.mulf %71, %82 : vector<32x128xf32>
      %84 = arith.addf %81, %83 : vector<32x128xf32>
      %85 = vector.broadcast %3 : f32 to vector<32x128xf32>
      %86 = arith.mulf %74, %85 : vector<32x128xf32>
      %87 = arith.addf %84, %86 : vector<32x128xf32>
      %cst = arith.constant 0.000000e+00 : f32
      %88 = vector.broadcast %cst : f32 to vector<32x128xf32>
      %89 = arith.maximumf %87, %88 : vector<32x128xf32>
      %90 = vector.broadcast %40 : f32 to vector<32x128xf32>
      %91 = arith.mulf %89, %90 : vector<32x128xf32>
      %92 = vector.broadcast %56 : f32 to vector<32x128xf32>
      %93 = arith.addf %91, %92 : vector<32x128xf32>
      %94 = vector.broadcast %48 : f32 to vector<32x128xf32>
      %95 = arith.mulf %89, %94 : vector<32x128xf32>
      %96 = vector.broadcast %57 : f32 to vector<32x128xf32>
      %97 = arith.addf %95, %96 : vector<32x128xf32>
      %98 = vector.broadcast %4 : f32 to vector<32x128xf32>
      %99 = arith.mulf %65, %98 : vector<32x128xf32>
      %100 = vector.broadcast %33 : f32 to vector<32x128xf32>
      %101 = arith.addf %99, %100 : vector<32x128xf32>
      %102 = vector.broadcast %5 : f32 to vector<32x128xf32>
      %103 = arith.mulf %68, %102 : vector<32x128xf32>
      %104 = arith.addf %101, %103 : vector<32x128xf32>
      %105 = vector.broadcast %6 : f32 to vector<32x128xf32>
      %106 = arith.mulf %71, %105 : vector<32x128xf32>
      %107 = arith.addf %104, %106 : vector<32x128xf32>
      %108 = vector.broadcast %7 : f32 to vector<32x128xf32>
      %109 = arith.mulf %74, %108 : vector<32x128xf32>
      %110 = arith.addf %107, %109 : vector<32x128xf32>
      %cst_109 = arith.constant 0.000000e+00 : f32
      %111 = vector.broadcast %cst_109 : f32 to vector<32x128xf32>
      %112 = arith.maximumf %110, %111 : vector<32x128xf32>
      %113 = vector.broadcast %41 : f32 to vector<32x128xf32>
      %114 = arith.mulf %112, %113 : vector<32x128xf32>
      %115 = arith.addf %93, %114 : vector<32x128xf32>
      %116 = vector.broadcast %49 : f32 to vector<32x128xf32>
      %117 = arith.mulf %112, %116 : vector<32x128xf32>
      %118 = arith.addf %97, %117 : vector<32x128xf32>
      %119 = vector.broadcast %8 : f32 to vector<32x128xf32>
      %120 = arith.mulf %65, %119 : vector<32x128xf32>
      %121 = vector.broadcast %34 : f32 to vector<32x128xf32>
      %122 = arith.addf %120, %121 : vector<32x128xf32>
      %123 = vector.broadcast %9 : f32 to vector<32x128xf32>
      %124 = arith.mulf %68, %123 : vector<32x128xf32>
      %125 = arith.addf %122, %124 : vector<32x128xf32>
      %126 = vector.broadcast %10 : f32 to vector<32x128xf32>
      %127 = arith.mulf %71, %126 : vector<32x128xf32>
      %128 = arith.addf %125, %127 : vector<32x128xf32>
      %129 = vector.broadcast %11 : f32 to vector<32x128xf32>
      %130 = arith.mulf %74, %129 : vector<32x128xf32>
      %131 = arith.addf %128, %130 : vector<32x128xf32>
      %cst_110 = arith.constant 0.000000e+00 : f32
      %132 = vector.broadcast %cst_110 : f32 to vector<32x128xf32>
      %133 = arith.maximumf %131, %132 : vector<32x128xf32>
      %134 = vector.broadcast %42 : f32 to vector<32x128xf32>
      %135 = arith.mulf %133, %134 : vector<32x128xf32>
      %136 = arith.addf %115, %135 : vector<32x128xf32>
      %137 = vector.broadcast %50 : f32 to vector<32x128xf32>
      %138 = arith.mulf %133, %137 : vector<32x128xf32>
      %139 = arith.addf %118, %138 : vector<32x128xf32>
      %140 = vector.broadcast %12 : f32 to vector<32x128xf32>
      %141 = arith.mulf %65, %140 : vector<32x128xf32>
      %142 = vector.broadcast %35 : f32 to vector<32x128xf32>
      %143 = arith.addf %141, %142 : vector<32x128xf32>
      %144 = vector.broadcast %13 : f32 to vector<32x128xf32>
      %145 = arith.mulf %68, %144 : vector<32x128xf32>
      %146 = arith.addf %143, %145 : vector<32x128xf32>
      %147 = vector.broadcast %14 : f32 to vector<32x128xf32>
      %148 = arith.mulf %71, %147 : vector<32x128xf32>
      %149 = arith.addf %146, %148 : vector<32x128xf32>
      %150 = vector.broadcast %15 : f32 to vector<32x128xf32>
      %151 = arith.mulf %74, %150 : vector<32x128xf32>
      %152 = arith.addf %149, %151 : vector<32x128xf32>
      %cst_111 = arith.constant 0.000000e+00 : f32
      %153 = vector.broadcast %cst_111 : f32 to vector<32x128xf32>
      %154 = arith.maximumf %152, %153 : vector<32x128xf32>
      %155 = vector.broadcast %43 : f32 to vector<32x128xf32>
      %156 = arith.mulf %154, %155 : vector<32x128xf32>
      %157 = arith.addf %136, %156 : vector<32x128xf32>
      %158 = vector.broadcast %51 : f32 to vector<32x128xf32>
      %159 = arith.mulf %154, %158 : vector<32x128xf32>
      %160 = arith.addf %139, %159 : vector<32x128xf32>
      %161 = vector.broadcast %16 : f32 to vector<32x128xf32>
      %162 = arith.mulf %65, %161 : vector<32x128xf32>
      %163 = vector.broadcast %36 : f32 to vector<32x128xf32>
      %164 = arith.addf %162, %163 : vector<32x128xf32>
      %165 = vector.broadcast %17 : f32 to vector<32x128xf32>
      %166 = arith.mulf %68, %165 : vector<32x128xf32>
      %167 = arith.addf %164, %166 : vector<32x128xf32>
      %168 = vector.broadcast %18 : f32 to vector<32x128xf32>
      %169 = arith.mulf %71, %168 : vector<32x128xf32>
      %170 = arith.addf %167, %169 : vector<32x128xf32>
      %171 = vector.broadcast %19 : f32 to vector<32x128xf32>
      %172 = arith.mulf %74, %171 : vector<32x128xf32>
      %173 = arith.addf %170, %172 : vector<32x128xf32>
      %cst_112 = arith.constant 0.000000e+00 : f32
      %174 = vector.broadcast %cst_112 : f32 to vector<32x128xf32>
      %175 = arith.maximumf %173, %174 : vector<32x128xf32>
      %176 = vector.broadcast %44 : f32 to vector<32x128xf32>
      %177 = arith.mulf %175, %176 : vector<32x128xf32>
      %178 = arith.addf %157, %177 : vector<32x128xf32>
      %179 = vector.broadcast %52 : f32 to vector<32x128xf32>
      %180 = arith.mulf %175, %179 : vector<32x128xf32>
      %181 = arith.addf %160, %180 : vector<32x128xf32>
      %182 = vector.broadcast %20 : f32 to vector<32x128xf32>
      %183 = arith.mulf %65, %182 : vector<32x128xf32>
      %184 = vector.broadcast %37 : f32 to vector<32x128xf32>
      %185 = arith.addf %183, %184 : vector<32x128xf32>
      %186 = vector.broadcast %21 : f32 to vector<32x128xf32>
      %187 = arith.mulf %68, %186 : vector<32x128xf32>
      %188 = arith.addf %185, %187 : vector<32x128xf32>
      %189 = vector.broadcast %22 : f32 to vector<32x128xf32>
      %190 = arith.mulf %71, %189 : vector<32x128xf32>
      %191 = arith.addf %188, %190 : vector<32x128xf32>
      %192 = vector.broadcast %23 : f32 to vector<32x128xf32>
      %193 = arith.mulf %74, %192 : vector<32x128xf32>
      %194 = arith.addf %191, %193 : vector<32x128xf32>
      %cst_113 = arith.constant 0.000000e+00 : f32
      %195 = vector.broadcast %cst_113 : f32 to vector<32x128xf32>
      %196 = arith.maximumf %194, %195 : vector<32x128xf32>
      %197 = vector.broadcast %45 : f32 to vector<32x128xf32>
      %198 = arith.mulf %196, %197 : vector<32x128xf32>
      %199 = arith.addf %178, %198 : vector<32x128xf32>
      %200 = vector.broadcast %53 : f32 to vector<32x128xf32>
      %201 = arith.mulf %196, %200 : vector<32x128xf32>
      %202 = arith.addf %181, %201 : vector<32x128xf32>
      %203 = vector.broadcast %24 : f32 to vector<32x128xf32>
      %204 = arith.mulf %65, %203 : vector<32x128xf32>
      %205 = vector.broadcast %38 : f32 to vector<32x128xf32>
      %206 = arith.addf %204, %205 : vector<32x128xf32>
      %207 = vector.broadcast %25 : f32 to vector<32x128xf32>
      %208 = arith.mulf %68, %207 : vector<32x128xf32>
      %209 = arith.addf %206, %208 : vector<32x128xf32>
      %210 = vector.broadcast %26 : f32 to vector<32x128xf32>
      %211 = arith.mulf %71, %210 : vector<32x128xf32>
      %212 = arith.addf %209, %211 : vector<32x128xf32>
      %213 = vector.broadcast %27 : f32 to vector<32x128xf32>
      %214 = arith.mulf %74, %213 : vector<32x128xf32>
      %215 = arith.addf %212, %214 : vector<32x128xf32>
      %cst_114 = arith.constant 0.000000e+00 : f32
      %216 = vector.broadcast %cst_114 : f32 to vector<32x128xf32>
      %217 = arith.maximumf %215, %216 : vector<32x128xf32>
      %218 = vector.broadcast %46 : f32 to vector<32x128xf32>
      %219 = arith.mulf %217, %218 : vector<32x128xf32>
      %220 = arith.addf %199, %219 : vector<32x128xf32>
      %221 = vector.broadcast %54 : f32 to vector<32x128xf32>
      %222 = arith.mulf %217, %221 : vector<32x128xf32>
      %223 = arith.addf %202, %222 : vector<32x128xf32>
      %224 = vector.broadcast %28 : f32 to vector<32x128xf32>
      %225 = arith.mulf %65, %224 : vector<32x128xf32>
      %226 = vector.broadcast %39 : f32 to vector<32x128xf32>
      %227 = arith.addf %225, %226 : vector<32x128xf32>
      %228 = vector.broadcast %29 : f32 to vector<32x128xf32>
      %229 = arith.mulf %68, %228 : vector<32x128xf32>
      %230 = arith.addf %227, %229 : vector<32x128xf32>
      %231 = vector.broadcast %30 : f32 to vector<32x128xf32>
      %232 = arith.mulf %71, %231 : vector<32x128xf32>
      %233 = arith.addf %230, %232 : vector<32x128xf32>
      %234 = vector.broadcast %31 : f32 to vector<32x128xf32>
      %235 = arith.mulf %74, %234 : vector<32x128xf32>
      %236 = arith.addf %233, %235 : vector<32x128xf32>
      %cst_115 = arith.constant 0.000000e+00 : f32
      %237 = vector.broadcast %cst_115 : f32 to vector<32x128xf32>
      %238 = arith.maximumf %236, %237 : vector<32x128xf32>
      %239 = vector.broadcast %47 : f32 to vector<32x128xf32>
      %240 = arith.mulf %238, %239 : vector<32x128xf32>
      %241 = arith.addf %220, %240 : vector<32x128xf32>
      %242 = vector.broadcast %55 : f32 to vector<32x128xf32>
      %243 = arith.mulf %238, %242 : vector<32x128xf32>
      %244 = arith.addf %223, %243 : vector<32x128xf32>
      %c0_116 = arith.constant 0 : index
      %245 = arith.index_cast %62 : i32 to index
      %c0_117 = arith.constant 0 : index
      %246 = vector.load %arg6[%c0_116, %245, %c0_117] : memref<2x64x128xf32, #tpu.memory_space<vmem>>, vector<1x32x128xf32>
      %247 = vector.shape_cast %246 : vector<1x32x128xf32> to vector<32x128xf32>
      %248 = vector.shape_cast %241 : vector<32x128xf32> to vector<1x32x128xf32>
      tpu.vector_store %arg6[%c0_116, %245, %c0_117], %248 {strides = array<i32>} : memref<2x64x128xf32, #tpu.memory_space<vmem>>, vector<1x32x128xf32>,
      %c1_118 = arith.constant 1 : index
      %249 = arith.index_cast %62 : i32 to index
      %c0_119 = arith.constant 0 : index
      %250 = vector.load %arg6[%c1_118, %249, %c0_119] : memref<2x64x128xf32, #tpu.memory_space<vmem>>, vector<1x32x128xf32>
      %251 = vector.shape_cast %250 : vector<1x32x128xf32> to vector<32x128xf32>
      %252 = vector.shape_cast %244 : vector<32x128xf32> to vector<1x32x128xf32>
      tpu.vector_store %arg6[%c1_118, %249, %c0_119], %252 {strides = array<i32>} : memref<2x64x128xf32, #tpu.memory_space<vmem>>, vector<1x32x128xf32>,
    }
    %c2_i32_98 = arith.constant 2 : i32
    return
  }
  func.func @transform_0(%arg0: i32) -> (i32, i32, i32) {
    %c0_i32 = arith.constant 0 : i32
    %c0_i32_0 = arith.constant 0 : i32
    %c0_i32_1 = arith.constant 0 : i32
    return %c0_i32, %arg0, %c0_i32_0 : i32, i32, i32
  }
  func.func @transform_1(%arg0: i32) -> (i32, i32) {
    %c0_i32 = arith.constant 0 : i32
    %c0_i32_0 = arith.constant 0 : i32
    %c0_i32_1 = arith.constant 0 : i32
    return %c0_i32, %c0_i32_0 : i32, i32
  }
  func.func @transform_2(%arg0: i32) -> i32 {
    %c0_i32 = arith.constant 0 : i32
    %c0_i32_0 = arith.constant 0 : i32
    return %c0_i32 : i32
  }
  func.func @transform_3(%arg0: i32) -> (i32, i32) {
    %c0_i32 = arith.constant 0 : i32
    %c0_i32_0 = arith.constant 0 : i32
    %c0_i32_1 = arith.constant 0 : i32
    return %c0_i32, %c0_i32_0 : i32, i32
  }
  func.func @transform_4(%arg0: i32) -> i32 {
    %c0_i32 = arith.constant 0 : i32
    %c0_i32_0 = arith.constant 0 : i32
    return %c0_i32 : i32
  }
  func.func @transform_5(%arg0: i32) -> (i32, i32, i32) {
    %c0_i32 = arith.constant 0 : i32
    %c0_i32_0 = arith.constant 0 : i32
    %c0_i32_1 = arith.constant 0 : i32
    return %c0_i32, %arg0, %c0_i32_0 : i32, i32, i32
  }
}

</mosaic_0001>

<llo_original>
// kernel: tpu_custom_call.1
$region0: #{tpu_custom_call.1}
  #allocation0 [shape = 'u32[]', space=smem, size = 0x4, offset = 0x4, fixed_abs, tag = 'smem constant byte address 0x4 - core index']
  #allocation1 [shape = 'u32[144,128]{1,0:T(1,128)}', space=vmem, size = 0x12000, scoped, tag = 'internal scratch']
  %s0 = inlined_call_operand.vmem [shape: f32[4,65,128], index: 0, kind: input, shape index: {}]
  %s1 = inlined_call_operand.vmem [shape: f32[8,4], index: 1, kind: input, shape index: {}]
  %s2 = inlined_call_operand.vmem [shape: f32[8], index: 2, kind: input, shape index: {}]
  %s3 = inlined_call_operand.vmem [shape: f32[2,8], index: 3, kind: input, shape index: {}]
  %s4 = inlined_call_operand.vmem [shape: f32[2], index: 4, kind: input, shape index: {}]
  %s5 = inlined_call_operand.vmem [shape: f32[2,65,128], index: 5, kind: output, shape index: {}]
  %s6 = sld [smem:[#allocation0]]
  $region176: #{tpu_custom_call.1} parent=0
    _
  %s8 = ssub.s32 1, %s6
  %s9 = scalar_select 0, %s8, %s6
  $region1: #{tpu_custom_call.1} parent=0
    #allocation2 [shape = 'u8[262144]{0}', space=vmem, size = 0x40000, scoped, tag = 'input window, operand 0']
    #allocation3 [shape = 'u8[4096]{0}', space=smem, size = 0x1000, scoped, tag = 'input window, operand 1, single buffered']
    #allocation4 [shape = 's32[2]{0}', space=sflag, size = 0x8, scoped, tag = 'scoped memory for tpu_custom_call.1']
    #allocation5 [shape = 'u8[512]{0}', space=smem, size = 0x200, scoped, tag = 'input window, operand 2, single buffered']
    #allocation6 [shape = 's32[1]{0}', space=sflag, size = 0x4, scoped, tag = 'scoped memory for tpu_custom_call.1']
    #allocation7 [shape = 'u8[1024]{0}', space=smem, size = 0x400, scoped, tag = 'input window, operand 3, single buffered']
    #allocation8 [shape = 'u8[512]{0}', space=smem, size = 0x200, scoped, tag = 'input window, operand 4, single buffered']
    #allocation9 [shape = 's32[1]{0}', space=sflag, size = 0x4, scoped, tag = 'scoped memory for tpu_custom_call.1']
    #allocation10 [shape = 'u8[131072]{0}', space=vmem, size = 0x20000, scoped, tag = 'output window, operand 0']
    %10 = vsyncpa [#allocation4], 0
    %11 = vsyncpa [#allocation6], 0
    %12 = vsyncpa [#allocation9], 0
    loop: start=0, step=1, limit=4
    $region2: #{tpu_custom_call.1} parent=1 // loop_pre_header
      _
    $region3: #{tpu_custom_call.1} parent=1 // loop_header
      %s14 = sphi 0, %s18
      %p15 = scmp.ge.s32.totalorder %s14, 4
      %s24 = sphi 0, %s26
      %s27 = sphi 0, %s24
      %s28 = sphi 0, %s27
      %s44 = sphi 0, %s28
      %s48 = sphi 0, %s48
      %s50 = sphi 0, %s48
      %s51 = sphi 0, %s50
      %s65 = sphi 0, %s51
      %s69 = sphi 0, %s69
      %s71 = sphi 0, %s69
      %s72 = sphi 0, %s71
      %s86 = sphi 0, %s72
      %s90 = sphi 0, %s90
      %s92 = sphi 0, %s90
      %s93 = sphi 0, %s92
      %s107 = sphi 0, %s93
      %s111 = sphi 0, %s111
      %s113 = sphi 0, %s111
      %s114 = sphi 0, %s113
      %s128 = sphi 0, %s114
      %s134 = sphi 0, %s136
      %s137 = sphi 0, %s134
      %s138 = sphi 0, %s137
      %s154 = sphi 0, %s138
    $region4: #{tpu_custom_call.1} parent=1 // loop_header_branch
      %17 = sbr.rel (%p15) target = $region8
    $region5: #{tpu_custom_call.1} parent=1 // loop_body
      %s19 = ssub.s32 %s14, 1
      %s20 = ssub.s32 %s14, 2
      %s21 = sadd.s32 %s14, 1
      %s22 = ssub.s32 %s14, %s21
      %p23 = scmp.eq.s32.totalorder %s22, 0
      %s25 = sadd.s32 %s24, 1
      %s26 = scalar_select %p23, %s24, %s25
      %p29 = pneg %p23
      %p30 = scmp.eq.s32.totalorder %s14, 1
      %p31 = por %p29, %p30
      %p32 = scmp.ne.s32.totalorder %s24, %s27
      %p33 = scmp.eq.s32.totalorder %s14, 0
      %p34 = por %p32, %p33
      %p35 = scmp.ne.s32.totalorder %s24, %s27
      %p36 = scmp.eq.s32.totalorder %s19, 1
      %p37 = por %p35, %p36
      %p38 = scmp.ne.s32.totalorder %s27, %s28
      %p39 = scmp.eq.s32.totalorder %s19, 0
      %p40 = por %p38, %p39
      %p41 = scmp.ne.s32.totalorder %s27, %s28
      %p42 = scmp.eq.s32.totalorder %s20, 1
      %p43 = por %p41, %p42
      %p45 = scmp.ne.s32.totalorder %s28, %s44
      %p46 = scmp.eq.s32.totalorder %s20, 0
      %p47 = por %p45, %p46
      %s49 = sadd.s32 %s48, 1
      %p52 = scmp.eq.s32.totalorder %s14, 1
      %p53 = scmp.ne.s32.totalorder %s48, %s50
      %p54 = scmp.eq.s32.totalorder %s14, 0
      %p55 = por %p53, %p54
      %p56 = scmp.ne.s32.totalorder %s48, %s50
      %p57 = scmp.eq.s32.totalorder %s19, 1
      %p58 = por %p56, %p57
      %p59 = scmp.ne.s32.totalorder %s50, %s51
      %p60 = scmp.eq.s32.totalorder %s19, 0
      %p61 = por %p59, %p60
      %p62 = scmp.ne.s32.totalorder %s50, %s51
      %p63 = scmp.eq.s32.totalorder %s20, 1
      %p64 = por %p62, %p63
      %p66 = scmp.ne.s32.totalorder %s51, %s65
      %p67 = scmp.eq.s32.totalorder %s20, 0
      %p68 = por %p66, %p67
      %s70 = sadd.s32 %s69, 1
      %p73 = scmp.eq.s32.totalorder %s14, 1
      %p74 = scmp.ne.s32.totalorder %s69, %s71
      %p75 = scmp.eq.s32.totalorder %s14, 0
      %p76 = por %p74, %p75
      %p77 = scmp.ne.s32.totalorder %s69, %s71
      %p78 = scmp.eq.s32.totalorder %s19, 1
      %p79 = por %p77, %p78
      %p80 = scmp.ne.s32.totalorder %s71, %s72
      %p81 = scmp.eq.s32.totalorder %s19, 0
      %p82 = por %p80, %p81
      %p83 = scmp.ne.s32.totalorder %s71, %s72
      %p84 = scmp.eq.s32.totalorder %s20, 1
      %p85 = por %p83, %p84
      %p87 = scmp.ne.s32.totalorder %s72, %s86
      %p88 = scmp.eq.s32.totalorder %s20, 0
      %p89 = por %p87, %p88
      %s91 = sadd.s32 %s90, 1
      %p94 = scmp.eq.s32.totalorder %s14, 1
      %p95 = scmp.ne.s32.totalorder %s90, %s92
      %p96 = scmp.eq.s32.totalorder %s14, 0
      %p97 = por %p95, %p96
      %p98 = scmp.ne.s32.totalorder %s90, %s92
      %p99 = scmp.eq.s32.totalorder %s19, 1
      %p100 = por %p98, %p99
      %p101 = scmp.ne.s32.totalorder %s92, %s93
      %p102 = scmp.eq.s32.totalorder %s19, 0
      %p103 = por %p101, %p102
      %p104 = scmp.ne.s32.totalorder %s92, %s93
      %p105 = scmp.eq.s32.totalorder %s20, 1
      %p106 = por %p104, %p105
      %p108 = scmp.ne.s32.totalorder %s93, %s107
      %p109 = scmp.eq.s32.totalorder %s20, 0
      %p110 = por %p108, %p109
      %s112 = sadd.s32 %s111, 1
      %p115 = scmp.eq.s32.totalorder %s14, 1
      %p116 = scmp.ne.s32.totalorder %s111, %s113
      %p117 = scmp.eq.s32.totalorder %s14, 0
      %p118 = por %p116, %p117
      %p119 = scmp.ne.s32.totalorder %s111, %s113
      %p120 = scmp.eq.s32.totalorder %s19, 1
      %p121 = por %p119, %p120
      %p122 = scmp.ne.s32.totalorder %s113, %s114
      %p123 = scmp.eq.s32.totalorder %s19, 0
      %p124 = por %p122, %p123
      %p125 = scmp.ne.s32.totalorder %s113, %s114
      %p126 = scmp.eq.s32.totalorder %s20, 1
      %p127 = por %p125, %p126
      %p129 = scmp.ne.s32.totalorder %s114, %s128
      %p130 = scmp.eq.s32.totalorder %s20, 0
      %p131 = por %p129, %p130
      %s132 = ssub.s32 %s14, %s21
      %p133 = scmp.eq.s32.totalorder %s132, 0
      %s135 = sadd.s32 %s134, 1
      %s136 = scalar_select %p133, %s134, %s135
      %p139 = pneg %p133
      %p140 = scmp.eq.s32.totalorder %s14, 1
      %p141 = por %p139, %p140
      %p142 = scmp.ne.s32.totalorder %s134, %s137
      %p143 = scmp.eq.s32.totalorder %s14, 0
      %p144 = por %p142, %p143
      %p145 = scmp.ne.s32.totalorder %s134, %s137
      %p146 = scmp.eq.s32.totalorder %s19, 1
      %p147 = por %p145, %p146
      %p148 = scmp.ne.s32.totalorder %s137, %s138
      %p149 = scmp.eq.s32.totalorder %s19, 0
      %p150 = por %p148, %p149
      %p151 = scmp.ne.s32.totalorder %s137, %s138
      %p152 = scmp.eq.s32.totalorder %s20, 1
      %p153 = por %p151, %p152
      %p155 = scmp.ne.s32.totalorder %s138, %s154
      %p156 = scmp.eq.s32.totalorder %s20, 0
      %p157 = por %p155, %p156
      %p158 = scmp.le.s32.totalorder 1, %s14
      %p159 = scmp.lt.s32.totalorder %s14, 3
      %p160 = pnand %p158, %p159
      %p161 = pneg %p160
      // Predicated region
      $region9: #{tpu_custom_call.1} parent=5 // pred_check
        _
      $region10: #{tpu_custom_call.1} parent=5 // pred_check_branch
        %163 = sbr.rel (%p160) target = $region12
      $region11: #{tpu_custom_call.1} parent=5 // pred_region
        %s164 = ssub.s32 %s14, 1
        // Predicated region
        $region13: #{tpu_custom_call.1} parent=11 // pred_check
          %p165 = pneg %p61
        $region14: #{tpu_custom_call.1} parent=11 // pred_check_branch
          %167 = sbr.rel (%p165) target = $region16
        $region15: #{tpu_custom_call.1} parent=11 // pred_region
          %s169 = ssub.s32 128, 128
          %170 = vsyncadd [#allocation4], %s169
          %s172 = sshll.u32 %s1, 4
          %s173 = int_to_ptr.vmem [resolvable:$true] %s172
          %175 = dma.vmem_to_smem %s173, 128, [#allocation3], [#allocation4]
        $region16: #{tpu_custom_call.1} parent=11 // pred_fallthru
          _
        // Predicated region
        $region17: #{tpu_custom_call.1} parent=11 // pred_check
          %p176 = pneg %p82
        $region18: #{tpu_custom_call.1} parent=11 // pred_check_branch
          %178 = sbr.rel (%p176) target = $region20
        $region19: #{tpu_custom_call.1} parent=11 // pred_region
          %s180 = ssub.s32 16, 16
          %181 = vsyncadd [#allocation6], %s180
          %s183 = sshll.u32 %s2, 4
          %s184 = int_to_ptr.vmem [resolvable:$true] %s183
          %186 = dma.vmem_to_smem %s184, 16, [#allocation5], [#allocation6]
        $region20: #{tpu_custom_call.1} parent=11 // pred_fallthru
          _
        // Predicated region
        $region21: #{tpu_custom_call.1} parent=11 // pred_check
          %p187 = pneg %p103
        $region22: #{tpu_custom_call.1} parent=11 // pred_check_branch
          %189 = sbr.rel (%p187) target = $region24
        $region23: #{tpu_custom_call.1} parent=11 // pred_region
          %s191 = ssub.s32 32, 32
          %192 = vsyncadd [#allocation6], %s191
          %s194 = sshll.u32 %s3, 4
          %s195 = int_to_ptr.vmem [resolvable:$true] %s194
          %197 = dma.vmem_to_smem %s195, 32, [#allocation7], [#allocation6]
        $region24: #{tpu_custom_call.1} parent=11 // pred_fallthru
          _
        // Predicated region
        $region25: #{tpu_custom_call.1} parent=11 // pred_check
          %p198 = pneg %p124
        $region26: #{tpu_custom_call.1} parent=11 // pred_check_branch
          %200 = sbr.rel (%p198) target = $region28
        $region27: #{tpu_custom_call.1} parent=11 // pred_region
          %s202 = ssub.s32 16, 16
          %203 = vsyncadd [#allocation9], %s202
          %s205 = sshll.u32 %s4, 4
          %s206 = int_to_ptr.vmem [resolvable:$true] %s205
          %208 = dma.vmem_to_smem %s206, 16, [#allocation8], [#allocation9]
        $region28: #{tpu_custom_call.1} parent=11 // pred_fallthru
          _
      $region12: #{tpu_custom_call.1} parent=5 // pred_fallthru
        _
      %p209 = scmp.lt.s32.totalorder %s14, 2
      // Predicated region
      $region29: #{tpu_custom_call.1} parent=5 // pred_check
        %p210 = pneg %p209
      $region30: #{tpu_custom_call.1} parent=5 // pred_check_branch
        %212 = sbr.rel (%p210) target = $region32
      $region31: #{tpu_custom_call.1} parent=5 // pred_region
        // Predicated region
        $region33: #{tpu_custom_call.1} parent=31 // pred_check
          %p213 = pneg %p34
        $region34: #{tpu_custom_call.1} parent=31 // pred_check_branch
          %215 = sbr.rel (%p213) target = $region36
        $region35: #{tpu_custom_call.1} parent=31 // pred_region
          %s216 = sand.u32 %s24, 1
          %s217 = sand.u32 %s24, 1
          %s218 = smul.addr %s217, 256
          %s219 = scalar_lea.vmem [#allocation2], %s218
          %s220 = smul.u32 8, %s14
          %s221 = ssub.s32 9, %s220
          %p222 = scmp.lt.s32.totalorder %s221, 8
          %s223 = scalar_select %p222, %s221, 8
          %s224 = smul.u32 512, %s223
          %p225 = scmp.ne.s32.totalorder 0, %s224
          %s226 = smul.addr %s220, 8
          %s227 = scalar_lea.vmem %s0, %s226
          // Predicated region
          $region37: #{tpu_custom_call.1} parent=35 // pred_check
            %p228 = pneg %p225
          $region38: #{tpu_custom_call.1} parent=35 // pred_check_branch
            %230 = sbr.rel (%p228) target = $region40
          $region39: #{tpu_custom_call.1} parent=35 // pred_region
            // Predicated region
            $region41: #{tpu_custom_call.1} parent=39 // pred_check
              _
            $region42: #{tpu_custom_call.1} parent=39 // pred_check_branch
              %232 = sbr.rel (0) target = $region44
            $region43: #{tpu_custom_call.1} parent=39 // pred_region
              // Predicated region
              $region63: #{tpu_custom_call.1} parent=43 // pred_check
                _
              $region64: #{tpu_custom_call.1} parent=43 // pred_check_branch
                %350 = sbr.rel (0) target = $region66
              $region65: #{tpu_custom_call.1} parent=43 // pred_region
                %s351 = sshrl.u32 %s223, 3
                // While loop
                $region67: #{tpu_custom_call.1} parent=65 // loop_pre_header
                  _
                $region68: #{tpu_custom_call.1} parent=65 // loop_header
                  %s353 = sphi 0, %s355
                  %p354 = scmp.ge.s32.totalorder %s353, %s351
                  %s358 = sphi 0, %s427
                  %s359 = sphi %s227, %s430
                  %s360 = sphi %s219, %s431
                $region69: #{tpu_custom_call.1} parent=65 // loop_header_branch
                  %357 = sbr.rel (%p354) target = $region73
                $region70: #{tpu_custom_call.1} parent=65 // loop_body
                  %v361 = vld [vmem:[%s359] sm:$0xff]
                  %362 = vst [vmem:[%s360] sm:$0xff] %v361
                  %v363 = vld [vmem:[%s359 + $0x8] sm:$0xff]
                  %364 = vst [vmem:[%s360 + $0x8] sm:$0xff] %v363
                  %v365 = vld [vmem:[%s359 + $0x10] sm:$0xff]
                  %366 = vst [vmem:[%s360 + $0x10] sm:$0xff] %v365
                  %v367 = vld [vmem:[%s359 + $0x18] sm:$0xff]
                  %368 = vst [vmem:[%s360 + $0x18] sm:$0xff] %v367
                  %v369 = vld [vmem:[%s359 + $0x20] sm:$0xff]
                  %370 = vst [vmem:[%s360 + $0x20] sm:$0xff] %v369
                  %v371 = vld [vmem:[%s359 + $0x28] sm:$0xff]
                  %372 = vst [vmem:[%s360 + $0x28] sm:$0xff] %v371
                  %v373 = vld [vmem:[%s359 + $0x30] sm:$0xff]
                  %374 = vst [vmem:[%s360 + $0x30] sm:$0xff] %v373
                  %v375 = vld [vmem:[%s359 + $0x38] sm:$0xff]
                  %376 = vst [vmem:[%s360 + $0x38] sm:$0xff] %v375
                  %v377 = vld [vmem:[%s359 + $0x48] sm:$0xff]
                  %378 = vst [vmem:[%s360 + $0x40] sm:$0xff] %v377
                  %v379 = vld [vmem:[%s359 + $0x50] sm:$0xff]
                  %380 = vst [vmem:[%s360 + $0x48] sm:$0xff] %v379
                  %v381 = vld [vmem:[%s359 + $0x58] sm:$0xff]
                  %382 = vst [vmem:[%s360 + $0x50] sm:$0xff] %v381
                  %v383 = vld [vmem:[%s359 + $0x60] sm:$0xff]
                  %384 = vst [vmem:[%s360 + $0x58] sm:$0xff] %v383
                  %v385 = vld [vmem:[%s359 + $0x68] sm:$0xff]
                  %386 = vst [vmem:[%s360 + $0x60] sm:$0xff] %v385
                  %v387 = vld [vmem:[%s359 + $0x70] sm:$0xff]
                  %388 = vst [vmem:[%s360 + $0x68] sm:$0xff] %v387
                  %v389 = vld [vmem:[%s359 + $0x78] sm:$0xff]
                  %390 = vst [vmem:[%s360 + $0x70] sm:$0xff] %v389
                  %v391 = vld [vmem:[%s359 + $0x80] sm:$0xff]
                  %392 = vst [vmem:[%s360 + $0x78] sm:$0xff] %v391
                  %v393 = vld [vmem:[%s359 + $0x90] sm:$0xff]
                  %394 = vst [vmem:[%s360 + $0x80] sm:$0xff] %v393
                  %v395 = vld [vmem:[%s359 + $0x98] sm:$0xff]
                  %396 = vst [vmem:[%s360 + $0x88] sm:$0xff] %v395
                  %v397 = vld [vmem:[%s359 + $0xa0] sm:$0xff]
                  %398 = vst [vmem:[%s360 + $0x90] sm:$0xff] %v397
                  %v399 = vld [vmem:[%s359 + $0xa8] sm:$0xff]
                  %400 = vst [vmem:[%s360 + $0x98] sm:$0xff] %v399
                  %v401 = vld [vmem:[%s359 + $0xb0] sm:$0xff]
                  %402 = vst [vmem:[%s360 + $0xa0] sm:$0xff] %v401
                  %v403 = vld [vmem:[%s359 + $0xb8] sm:$0xff]
                  %404 = vst [vmem:[%s360 + $0xa8] sm:$0xff] %v403
                  %v405 = vld [vmem:[%s359 + $0xc0] sm:$0xff]
                  %406 = vst [vmem:[%s360 + $0xb0] sm:$0xff] %v405
                  %v407 = vld [vmem:[%s359 + $0xc8] sm:$0xff]
                  %408 = vst [vmem:[%s360 + $0xb8] sm:$0xff] %v407
                  %v409 = vld [vmem:[%s359 + $0xd8] sm:$0xff]
                  %410 = vst [vmem:[%s360 + $0xc0] sm:$0xff] %v409
                  %v411 = vld [vmem:[%s359 + $0xe0] sm:$0xff]
                  %412 = vst [vmem:[%s360 + $0xc8] sm:$0xff] %v411
                  %v413 = vld [vmem:[%s359 + $0xe8] sm:$0xff]
                  %414 = vst [vmem:[%s360 + $0xd0] sm:$0xff] %v413
                  %v415 = vld [vmem:[%s359 + $0xf0] sm:$0xff]
                  %416 = vst [vmem:[%s360 + $0xd8] sm:$0xff] %v415
                  %v417 = vld [vmem:[%s359 + $0xf8] sm:$0xff]
                  %418 = vst [vmem:[%s360 + $0xe0] sm:$0xff] %v417
                  %v419 = vld [vmem:[%s359 + $0x100] sm:$0xff]
                  %420 = vst [vmem:[%s360 + $0xe8] sm:$0xff] %v419
                  %v421 = vld [vmem:[%s359 + $0x108] sm:$0xff]
                  %422 = vst [vmem:[%s360 + $0xf0] sm:$0xff] %v421
                  %v423 = vld [vmem:[%s359 + $0x110] sm:$0xff]
                  %424 = vst [vmem:[%s360 + $0xf8] sm:$0xff] %v423
                  %s425 = sadd.s32 1, %s358
                  %p426 = scmp.ge.s32.totalorder %s425, %s351
                  %s427 = scalar_select %p426, 0, %s425
                  %s428 = smul.u32 %s427, 64
                  %s429 = smul.u32 %s427, 64
                  %s430 = scalar_lea.vmem %s227, %s428
                  %s431 = scalar_lea.vmem %s219, %s429 [#allocation2]
                $region71: #{tpu_custom_call.1} parent=65 // loop_footer
                  %s355 = sadd.s32 %s353, 1
                $region72: #{tpu_custom_call.1} parent=65 // loop_footer_branch
                  %352 = sbr.rel target = $region68
                $region73: #{tpu_custom_call.1} parent=65 // loop_exit
                  _
                %s432 = sshrl.u32 %s223, 3
                %s433 = sand.u32 %s223, 7
                %s434 = smul.u32 %s432, 8
                %s435 = smul.u32 8, %s434
                %s436 = scalar_lea.vmem %s227, %s435
                %s437 = smul.u32 8, %s434
                %s438 = scalar_lea.vmem %s219, %s437 [#allocation2]
                // While loop
                $region74: #{tpu_custom_call.1} parent=65 // loop_pre_header
                  _
                $region75: #{tpu_custom_call.1} parent=65 // loop_header
                  %s440 = sphi 0, %s442
                  %p441 = scmp.ge.s32.totalorder %s440, %s433
                  %s445 = sphi 0, %s458
                  %s446 = sphi %s436, %s461
                  %s447 = sphi %s438, %s462
                $region76: #{tpu_custom_call.1} parent=65 // loop_header_branch
                  %444 = sbr.rel (%p441) target = $region80
                $region77: #{tpu_custom_call.1} parent=65 // loop_body
                  %v448 = vld [vmem:[%s446] sm:$0xff]
                  %449 = vst [vmem:[%s447] sm:$0xff] %v448
                  %v450 = vld [vmem:[%s446 + $0x48] sm:$0xff]
                  %451 = vst [vmem:[%s447 + $0x40] sm:$0xff] %v450
                  %v452 = vld [vmem:[%s446 + $0x90] sm:$0xff]
                  %453 = vst [vmem:[%s447 + $0x80] sm:$0xff] %v452
                  %v454 = vld [vmem:[%s446 + $0xd8] sm:$0xff]
                  %455 = vst [vmem:[%s447 + $0xc0] sm:$0xff] %v454
                  %s456 = sadd.s32 1, %s445
                  %p457 = scmp.ge.s32.totalorder %s456, %s433
                  %s458 = scalar_select %p457, 0, %s456
                  %s459 = smul.u32 %s458, 8
                  %s460 = smul.u32 %s458, 8
                  %s461 = scalar_lea.vmem %s436, %s459
                  %s462 = scalar_lea.vmem %s438, %s460 [#allocation2]
                $region78: #{tpu_custom_call.1} parent=65 // loop_footer
                  %s442 = sadd.s32 %s440, 1
                $region79: #{tpu_custom_call.1} parent=65 // loop_footer_branch
                  %439 = sbr.rel target = $region75
                $region80: #{tpu_custom_call.1} parent=65 // loop_exit
                  _
              $region66: #{tpu_custom_call.1} parent=43 // pred_fallthru
                _
              // Predicated region
              $region81: #{tpu_custom_call.1} parent=43 // pred_check
                _
              $region82: #{tpu_custom_call.1} parent=43 // pred_check_branch
                %464 = sbr.rel target = $region84
              $region83: #{tpu_custom_call.1} parent=43 // pred_region
                _
              $region84: #{tpu_custom_call.1} parent=43 // pred_fallthru
                _
            $region44: #{tpu_custom_call.1} parent=39 // pred_fallthru
              _
            // Predicated region
            $region45: #{tpu_custom_call.1} parent=39 // pred_check
              _
            $region46: #{tpu_custom_call.1} parent=39 // pred_check_branch
              %234 = sbr.rel target = $region48
            $region47: #{tpu_custom_call.1} parent=39 // pred_region
              %s236 = ssub.s32 256, 1
              %s237 = sshrl.u32 %s223, 3
              // While loop
              $region49: #{tpu_custom_call.1} parent=47 // loop_pre_header
                _
              $region50: #{tpu_custom_call.1} parent=47 // loop_header
                %s239 = sphi 0, %s241
                %p240 = scmp.ge.s32.totalorder %s239, %s237
                %s244 = sphi 0, %s313
                %s245 = sphi %s227, %s316
                %s246 = sphi %s219, %s317
              $region51: #{tpu_custom_call.1} parent=47 // loop_header_branch
                %243 = sbr.rel (%p240) target = $region55
              $region52: #{tpu_custom_call.1} parent=47 // loop_body
                %v247 = vld [vmem:[%s245] sm:%s236]
                %248 = vst [vmem:[%s246] sm:%s236] %v247
                %v249 = vld [vmem:[%s245 + $0x8] sm:%s236]
                %250 = vst [vmem:[%s246 + $0x8] sm:%s236] %v249
                %v251 = vld [vmem:[%s245 + $0x10] sm:%s236]
                %252 = vst [vmem:[%s246 + $0x10] sm:%s236] %v251
                %v253 = vld [vmem:[%s245 + $0x18] sm:%s236]
                %254 = vst [vmem:[%s246 + $0x18] sm:%s236] %v253
                %v255 = vld [vmem:[%s245 + $0x20] sm:%s236]
                %256 = vst [vmem:[%s246 + $0x20] sm:%s236] %v255
                %v257 = vld [vmem:[%s245 + $0x28] sm:%s236]
                %258 = vst [vmem:[%s246 + $0x28] sm:%s236] %v257
                %v259 = vld [vmem:[%s245 + $0x30] sm:%s236]
                %260 = vst [vmem:[%s246 + $0x30] sm:%s236] %v259
                %v261 = vld [vmem:[%s245 + $0x38] sm:%s236]
                %262 = vst [vmem:[%s246 + $0x38] sm:%s236] %v261
                %v263 = vld [vmem:[%s245 + $0x48] sm:%s236]
                %264 = vst [vmem:[%s246 + $0x40] sm:%s236] %v263
                %v265 = vld [vmem:[%s245 + $0x50] sm:%s236]
                %266 = vst [vmem:[%s246 + $0x48] sm:%s236] %v265
                %v267 = vld [vmem:[%s245 + $0x58] sm:%s236]
                %268 = vst [vmem:[%s246 + $0x50] sm:%s236] %v267
                %v269 = vld [vmem:[%s245 + $0x60] sm:%s236]
                %270 = vst [vmem:[%s246 + $0x58] sm:%s236] %v269
                %v271 = vld [vmem:[%s245 + $0x68] sm:%s236]
                %272 = vst [vmem:[%s246 + $0x60] sm:%s236] %v271
                %v273 = vld [vmem:[%s245 + $0x70] sm:%s236]
                %274 = vst [vmem:[%s246 + $0x68] sm:%s236] %v273
                %v275 = vld [vmem:[%s245 + $0x78] sm:%s236]
                %276 = vst [vmem:[%s246 + $0x70] sm:%s236] %v275
                %v277 = vld [vmem:[%s245 + $0x80] sm:%s236]
                %278 = vst [vmem:[%s246 + $0x78] sm:%s236] %v277
                %v279 = vld [vmem:[%s245 + $0x90] sm:%s236]
                %280 = vst [vmem:[%s246 + $0x80] sm:%s236] %v279
                %v281 = vld [vmem:[%s245 + $0x98] sm:%s236]
                %282 = vst [vmem:[%s246 + $0x88] sm:%s236] %v281
                %v283 = vld [vmem:[%s245 + $0xa0] sm:%s236]
                %284 = vst [vmem:[%s246 + $0x90] sm:%s236] %v283
                %v285 = vld [vmem:[%s245 + $0xa8] sm:%s236]
                %286 = vst [vmem:[%s246 + $0x98] sm:%s236] %v285
                %v287 = vld [vmem:[%s245 + $0xb0] sm:%s236]
                %288 = vst [vmem:[%s246 + $0xa0] sm:%s236] %v287
                %v289 = vld [vmem:[%s245 + $0xb8] sm:%s236]
                %290 = vst [vmem:[%s246 + $0xa8] sm:%s236] %v289
                %v291 = vld [vmem:[%s245 + $0xc0] sm:%s236]
                %292 = vst [vmem:[%s246 + $0xb0] sm:%s236] %v291
                %v293 = vld [vmem:[%s245 + $0xc8] sm:%s236]
                %294 = vst [vmem:[%s246 + $0xb8] sm:%s236] %v293
                %v295 = vld [vmem:[%s245 + $0xd8] sm:%s236]
                %296 = vst [vmem:[%s246 + $0xc0] sm:%s236] %v295
                %v297 = vld [vmem:[%s245 + $0xe0] sm:%s236]
                %298 = vst [vmem:[%s246 + $0xc8] sm:%s236] %v297
                %v299 = vld [vmem:[%s245 + $0xe8] sm:%s236]
                %300 = vst [vmem:[%s246 + $0xd0] sm:%s236] %v299
                %v301 = vld [vmem:[%s245 + $0xf0] sm:%s236]
                %302 = vst [vmem:[%s246 + $0xd8] sm:%s236] %v301
                %v303 = vld [vmem:[%s245 + $0xf8] sm:%s236]
                %304 = vst [vmem:[%s246 + $0xe0] sm:%s236] %v303
                %v305 = vld [vmem:[%s245 + $0x100] sm:%s236]
                %306 = vst [vmem:[%s246 + $0xe8] sm:%s236] %v305
                %v307 = vld [vmem:[%s245 + $0x108] sm:%s236]
                %308 = vst [vmem:[%s246 + $0xf0] sm:%s236] %v307
                %v309 = vld [vmem:[%s245 + $0x110] sm:%s236]
                %310 = vst [vmem:[%s246 + $0xf8] sm:%s236] %v309
                %s311 = sadd.s32 1, %s244
                %p312 = scmp.ge.s32.totalorder %s311, %s237
                %s313 = scalar_select %p312, 0, %s311
                %s314 = smul.u32 %s313, 64
                %s315 = smul.u32 %s313, 64
                %s316 = scalar_lea.vmem %s227, %s314
                %s317 = scalar_lea.vmem %s219, %s315 [#allocation2]
              $region53: #{tpu_custom_call.1} parent=47 // loop_footer
                %s241 = sadd.s32 %s239, 1
              $region54: #{tpu_custom_call.1} parent=47 // loop_footer_branch
                %238 = sbr.rel target = $region50
              $region55: #{tpu_custom_call.1} parent=47 // loop_exit
                _
              %s318 = sshrl.u32 %s223, 3
              %s319 = sand.u32 %s223, 7
              %s320 = smul.u32 %s318, 8
              %s321 = smul.u32 8, %s320
              %s322 = scalar_lea.vmem %s227, %s321
              %s323 = smul.u32 8, %s320
              %s324 = scalar_lea.vmem %s219, %s323 [#allocation2]
              // While loop
              $region56: #{tpu_custom_call.1} parent=47 // loop_pre_header
                _
              $region57: #{tpu_custom_call.1} parent=47 // loop_header
                %s326 = sphi 0, %s328
                %p327 = scmp.ge.s32.totalorder %s326, %s319
                %s331 = sphi 0, %s344
                %s332 = sphi %s322, %s347
                %s333 = sphi %s324, %s348
              $region58: #{tpu_custom_call.1} parent=47 // loop_header_branch
                %330 = sbr.rel (%p327) target = $region62
              $region59: #{tpu_custom_call.1} parent=47 // loop_body
                %v334 = vld [vmem:[%s332] sm:%s236]
                %335 = vst [vmem:[%s333] sm:%s236] %v334
                %v336 = vld [vmem:[%s332 + $0x48] sm:%s236]
                %337 = vst [vmem:[%s333 + $0x40] sm:%s236] %v336
                %v338 = vld [vmem:[%s332 + $0x90] sm:%s236]
                %339 = vst [vmem:[%s333 + $0x80] sm:%s236] %v338
                %v340 = vld [vmem:[%s332 + $0xd8] sm:%s236]
                %341 = vst [vmem:[%s333 + $0xc0] sm:%s236] %v340
                %s342 = sadd.s32 1, %s331
                %p343 = scmp.ge.s32.totalorder %s342, %s319
                %s344 = scalar_select %p343, 0, %s342
                %s345 = smul.u32 %s344, 8
                %s346 = smul.u32 %s344, 8
                %s347 = scalar_lea.vmem %s322, %s345
                %s348 = scalar_lea.vmem %s324, %s346 [#allocation2]
              $region60: #{tpu_custom_call.1} parent=47 // loop_footer
                %s328 = sadd.s32 %s326, 1
              $region61: #{tpu_custom_call.1} parent=47 // loop_footer_branch
                %325 = sbr.rel target = $region57
              $region62: #{tpu_custom_call.1} parent=47 // loop_exit
                _
            $region48: #{tpu_custom_call.1} parent=39 // pred_fallthru
              _
          $region40: #{tpu_custom_call.1} parent=35 // pred_fallthru
            _
          %465 = vnop
        $region36: #{tpu_custom_call.1} parent=31 // pred_fallthru
          _
      $region32: #{tpu_custom_call.1} parent=5 // pred_fallthru
        _
      %p466 = scmp.le.s32.totalorder 1, %s14
      %p467 = scmp.lt.s32.totalorder %s14, 3
      %p468 = pnand %p466, %p467
      %p469 = pneg %p468
      // Predicated region
      $region85: #{tpu_custom_call.1} parent=5 // pred_check
        _
      $region86: #{tpu_custom_call.1} parent=5 // pred_check_branch
        %471 = sbr.rel (%p468) target = $region88
      $region87: #{tpu_custom_call.1} parent=5 // pred_region
        %s472 = ssub.s32 %s14, 1
        %s473 = sand.u32 %s27, 1
        %s474 = sand.u32 %s27, 1
        %s475 = smul.addr %s474, 256
        %s476 = scalar_lea.vmem [#allocation2], %s475
        // Predicated region
        $region89: #{tpu_custom_call.1} parent=87 // pred_check
          %p477 = pneg %p40
        $region90: #{tpu_custom_call.1} parent=87 // pred_check_branch
          %479 = sbr.rel (%p477) target = $region92
        $region91: #{tpu_custom_call.1} parent=87 // pred_region
          _
        $region92: #{tpu_custom_call.1} parent=87 // pred_fallthru
          _
        // Predicated region
        $region93: #{tpu_custom_call.1} parent=87 // pred_check
          %p480 = pneg %p61
        $region94: #{tpu_custom_call.1} parent=87 // pred_check_branch
          %482 = sbr.rel (%p480) target = $region96
        $region95: #{tpu_custom_call.1} parent=87 // pred_region
          %483 = dma.done [#allocation4], 128
        $region96: #{tpu_custom_call.1} parent=87 // pred_fallthru
          _
        // Predicated region
        $region97: #{tpu_custom_call.1} parent=87 // pred_check
          %p484 = pneg %p82
        $region98: #{tpu_custom_call.1} parent=87 // pred_check_branch
          %486 = sbr.rel (%p484) target = $region100
        $region99: #{tpu_custom_call.1} parent=87 // pred_region
          %487 = dma.done [#allocation6], 16
        $region100: #{tpu_custom_call.1} parent=87 // pred_fallthru
          _
        // Predicated region
        $region101: #{tpu_custom_call.1} parent=87 // pred_check
          %p488 = pneg %p103
        $region102: #{tpu_custom_call.1} parent=87 // pred_check_branch
          %490 = sbr.rel (%p488) target = $region104
        $region103: #{tpu_custom_call.1} parent=87 // pred_region
          %491 = dma.done [#allocation6], 32
        $region104: #{tpu_custom_call.1} parent=87 // pred_fallthru
          _
        // Predicated region
        $region105: #{tpu_custom_call.1} parent=87 // pred_check
          %p492 = pneg %p124
        $region106: #{tpu_custom_call.1} parent=87 // pred_check_branch
          %494 = sbr.rel (%p492) target = $region108
        $region107: #{tpu_custom_call.1} parent=87 // pred_region
          %495 = dma.done [#allocation9], 16
        $region108: #{tpu_custom_call.1} parent=87 // pred_fallthru
          _
        %496 = sfence
        %s497 = sand.u32 %s27, 1
        %s498 = sand.u32 %s27, 1
        %s499 = smul.addr %s498, 256
        %s500 = scalar_lea.vmem [#allocation2], %s499
        %p501 = pneg %p40
        %p502 = pneg %p37
        %p503 = pneg %p61
        %p504 = pneg %p58
        %p505 = pneg %p82
        %p506 = pneg %p79
        %p507 = pneg %p103
        %p508 = pneg %p100
        %p509 = pneg %p124
        %p510 = pneg %p121
        %p511 = pneg %p150
        %p512 = pneg %p147
        %s513 = sand.u32 %s137, 1
        %s514 = sand.u32 %s137, 1
        %s515 = smul.addr %s514, 128
        %s516 = scalar_lea.vmem [#allocation10], %s515
        %s517 = smul.u32 8, %s19
        %s518 = ssub.s32 9, %s517
        %p519 = scmp.lt.s32.totalorder %s518, 8
        %s520 = scalar_select %p519, %s518, 8
        %s521 = smul.u32 512, %s520
        %s522 = smul.u32 8, %s19
        %s523 = ssub.s32 9, %s522
        %p524 = scmp.lt.s32.totalorder %s523, 8
        %s525 = scalar_select %p524, %s523, 8
        %s526 = smul.u32 256, %s525
        %s527 = sld [smem:[#allocation3]]
        %s528 = sld [smem:[#allocation3 + $0x1]]
        %s529 = sld [smem:[#allocation3 + $0x2]]
        %s530 = sld [smem:[#allocation3 + $0x3]]
        %s531 = sld [smem:[#allocation3 + $0x80]]
        %s532 = sld [smem:[#allocation3 + $0x81]]
        %s533 = sld [smem:[#allocation3 + $0x82]]
        %s534 = sld [smem:[#allocation3 + $0x83]]
        %s535 = sld [smem:[#allocation3 + $0x100]]
        %s536 = sld [smem:[#allocation3 + $0x101]]
        %s537 = sld [smem:[#allocation3 + $0x102]]
        %s538 = sld [smem:[#allocation3 + $0x103]]
        %s539 = sld [smem:[#allocation3 + $0x180]]
        %s540 = sld [smem:[#allocation3 + $0x181]]
        %s541 = sld [smem:[#allocation3 + $0x182]]
        %s542 = sld [smem:[#allocation3 + $0x183]]
        %s543 = sld [smem:[#allocation3 + $0x200]]
        %s544 = sld [smem:[#allocation3 + $0x201]]
        %s545 = sld [smem:[#allocation3 + $0x202]]
        %s546 = sld [smem:[#allocation3 + $0x203]]
        %s547 = sld [smem:[#allocation3 + $0x280]]
        %s548 = sld [smem:[#allocation3 + $0x281]]
        %s549 = sld [smem:[#allocation3 + $0x282]]
        %s550 = sld [smem:[#allocation3 + $0x283]]
        %s551 = sld [smem:[#allocation3 + $0x300]]
        %s552 = sld [smem:[#allocation3 + $0x301]]
        %s553 = sld [smem:[#allocation3 + $0x302]]
        %s554 = sld [smem:[#allocation3 + $0x303]]
        %s555 = sld [smem:[#allocation3 + $0x380]]
        %s556 = sld [smem:[#allocation3 + $0x381]]
        %s557 = sld [smem:[#allocation3 + $0x382]]
        %s558 = sld [smem:[#allocation3 + $0x383]]
        %s559 = sld [smem:[#allocation5]]
        %s560 = sld [smem:[#allocation5 + $0x1]]
        %s561 = sld [smem:[#allocation5 + $0x2]]
        %s562 = sld [smem:[#allocation5 + $0x3]]
        %s563 = sld [smem:[#allocation5 + $0x4]]
        %s564 = sld [smem:[#allocation5 + $0x5]]
        %s565 = sld [smem:[#allocation5 + $0x6]]
        %s566 = sld [smem:[#allocation5 + $0x7]]
        %s567 = sld [smem:[#allocation7]]
        %s568 = sld [smem:[#allocation7 + $0x1]]
        %s569 = sld [smem:[#allocation7 + $0x2]]
        %s570 = sld [smem:[#allocation7 + $0x3]]
        %s571 = sld [smem:[#allocation7 + $0x4]]
        %s572 = sld [smem:[#allocation7 + $0x5]]
        %s573 = sld [smem:[#allocation7 + $0x6]]
        %s574 = sld [smem:[#allocation7 + $0x7]]
        %s575 = sld [smem:[#allocation7 + $0x80]]
        %s576 = sld [smem:[#allocation7 + $0x81]]
        %s577 = sld [smem:[#allocation7 + $0x82]]
        %s578 = sld [smem:[#allocation7 + $0x83]]
        %s579 = sld [smem:[#allocation7 + $0x84]]
        %s580 = sld [smem:[#allocation7 + $0x85]]
        %s581 = sld [smem:[#allocation7 + $0x86]]
        %s582 = sld [smem:[#allocation7 + $0x87]]
        %s583 = sld [smem:[#allocation8]]
        %s584 = sld [smem:[#allocation8 + $0x1]]
        loop: start=0, step=1, limit=2
        $region109: #{tpu_custom_call.1} parent=87 // loop_pre_header
          _
        $region110: #{tpu_custom_call.1} parent=87 // loop_header
          %s586 = sphi 0, %s590
          %p587 = scmp.ge.s32.totalorder %s586, 2
        $region111: #{tpu_custom_call.1} parent=87 // loop_header_branch
          %589 = sbr.rel (%p587) target = $region115
        $region112: #{tpu_custom_call.1} parent=87 // loop_body
          %s591 = smul.u32 %s586, 32
          %s592 = scalar_lea.vmem %s476, %s591 [#allocation2]
          %v593 = vld [vmem:[%s592] sm:$0xff]
          %v594 = vld [vmem:[%s592 + $0x8] sm:$0xff]
          %v595 = vld [vmem:[%s592 + $0x10] sm:$0xff]
          %v596 = vld [vmem:[%s592 + $0x18] sm:$0xff]
          %s597 = sadd.s32 %s591, 64
          %s598 = scalar_lea.vmem %s476, %s597 [#allocation2]
          %v599 = vld [vmem:[%s598] sm:$0xff]
          %v600 = vld [vmem:[%s598 + $0x8] sm:$0xff]
          %v601 = vld [vmem:[%s598 + $0x10] sm:$0xff]
          %v602 = vld [vmem:[%s598 + $0x18] sm:$0xff]
          %s603 = sadd.s32 %s591, 128
          %s604 = scalar_lea.vmem %s476, %s603 [#allocation2]
          %v605 = vld [vmem:[%s604] sm:$0xff]
          %v606 = vld [vmem:[%s604 + $0x8] sm:$0xff]
          %v607 = vld [vmem:[%s604 + $0x10] sm:$0xff]
          %v608 = vld [vmem:[%s604 + $0x18] sm:$0xff]
          %s609 = sadd.s32 %s591, 192
          %s610 = scalar_lea.vmem %s476, %s609 [#allocation2]
          %v611 = vld [vmem:[%s610] sm:$0xff]
          %v612 = vld [vmem:[%s610 + $0x8] sm:$0xff]
          %v613 = vld [vmem:[%s610 + $0x10] sm:$0xff]
          %v614 = vld [vmem:[%s610 + $0x18] sm:$0xff]
          %v615 = vstv %s527
          %v616 = vmul.f32 %v593, %v615
          %v617 = vmul.f32 %v594, %v615
          %v618 = vmul.f32 %v595, %v615
          %v619 = vmul.f32 %v596, %v615
          %v620 = vstv %s559
          %v621 = vadd.f32 %v616, %v620
          %v622 = vadd.f32 %v617, %v620
          %v623 = vadd.f32 %v618, %v620
          %v624 = vadd.f32 %v619, %v620
          %v625 = vstv %s528
          %v626 = vmul.f32 %v599, %v625
          %v627 = vmul.f32 %v600, %v625
          %v628 = vmul.f32 %v601, %v625
          %v629 = vmul.f32 %v602, %v625
          %v630 = vadd.f32 %v621, %v626
          %v631 = vadd.f32 %v622, %v627
          %v632 = vadd.f32 %v623, %v628
          %v633 = vadd.f32 %v624, %v629
          %v634 = vstv %s529
          %v635 = vmul.f32 %v605, %v634
          %v636 = vmul.f32 %v606, %v634
          %v637 = vmul.f32 %v607, %v634
          %v638 = vmul.f32 %v608, %v634
          %v639 = vadd.f32 %v630, %v635
          %v640 = vadd.f32 %v631, %v636
          %v641 = vadd.f32 %v632, %v637
          %v642 = vadd.f32 %v633, %v638
          %v643 = vstv %s530
          %v644 = vmul.f32 %v611, %v643
          %v645 = vmul.f32 %v612, %v643
          %v646 = vmul.f32 %v613, %v643
          %v647 = vmul.f32 %v614, %v643
          %v648 = vadd.f32 %v639, %v644
          %v649 = vadd.f32 %v640, %v645
          %v650 = vadd.f32 %v641, %v646
          %v651 = vadd.f32 %v642, %v647
          %v652 = vmax.f32 %v648, 0.0
          %v653 = vmax.f32 %v649, 0.0
          %v654 = vmax.f32 %v650, 0.0
          %v655 = vmax.f32 %v651, 0.0
          %v656 = vstv %s567
          %v657 = vmul.f32 %v652, %v656
          %v658 = vmul.f32 %v653, %v656
          %v659 = vmul.f32 %v654, %v656
          %v660 = vmul.f32 %v655, %v656
          %v661 = vstv %s583
          %v662 = vadd.f32 %v657, %v661
          %v663 = vadd.f32 %v658, %v661
          %v664 = vadd.f32 %v659, %v661
          %v665 = vadd.f32 %v660, %v661
          %v666 = vstv %s575
          %v667 = vmul.f32 %v652, %v666
          %v668 = vmul.f32 %v653, %v666
          %v669 = vmul.f32 %v654, %v666
          %v670 = vmul.f32 %v655, %v666
          %v671 = vstv %s584
          %v672 = vadd.f32 %v667, %v671
          %v673 = vadd.f32 %v668, %v671
          %v674 = vadd.f32 %v669, %v671
          %v675 = vadd.f32 %v670, %v671
          %v676 = vstv %s531
          %v677 = vmul.f32 %v593, %v676
          %v678 = vmul.f32 %v594, %v676
          %v679 = vmul.f32 %v595, %v676
          %v680 = vmul.f32 %v596, %v676
          %v681 = vstv %s560
          %v682 = vadd.f32 %v677, %v681
          %v683 = vadd.f32 %v678, %v681
          %v684 = vadd.f32 %v679, %v681
          %v685 = vadd.f32 %v680, %v681
          %v686 = vstv %s532
          %v687 = vmul.f32 %v599, %v686
          %v688 = vmul.f32 %v600, %v686
          %v689 = vmul.f32 %v601, %v686
          %v690 = vmul.f32 %v602, %v686
          %v691 = vadd.f32 %v682, %v687
          %v692 = vadd.f32 %v683, %v688
          %v693 = vadd.f32 %v684, %v689
          %v694 = vadd.f32 %v685, %v690
          %v695 = vstv %s533
          %v696 = vmul.f32 %v605, %v695
          %v697 = vmul.f32 %v606, %v695
          %v698 = vmul.f32 %v607, %v695
          %v699 = vmul.f32 %v608, %v695
          %v700 = vadd.f32 %v691, %v696
          %v701 = vadd.f32 %v692, %v697
          %v702 = vadd.f32 %v693, %v698
          %v703 = vadd.f32 %v694, %v699
          %v704 = vstv %s534
          %v705 = vmul.f32 %v611, %v704
          %v706 = vmul.f32 %v612, %v704
          %v707 = vmul.f32 %v613, %v704
          %v708 = vmul.f32 %v614, %v704
          %v709 = vadd.f32 %v700, %v705
          %v710 = vadd.f32 %v701, %v706
          %v711 = vadd.f32 %v702, %v707
          %v712 = vadd.f32 %v703, %v708
          %v713 = vmax.f32 %v709, 0.0
          %v714 = vmax.f32 %v710, 0.0
          %v715 = vmax.f32 %v711, 0.0
          %v716 = vmax.f32 %v712, 0.0
          %v717 = vstv %s568
          %v718 = vmul.f32 %v713, %v717
          %v719 = vmul.f32 %v714, %v717
          %v720 = vmul.f32 %v715, %v717
          %v721 = vmul.f32 %v716, %v717
          %v722 = vadd.f32 %v662, %v718
          %v723 = vadd.f32 %v663, %v719
          %v724 = vadd.f32 %v664, %v720
          %v725 = vadd.f32 %v665, %v721
          %v726 = vstv %s576
          %v727 = vmul.f32 %v713, %v726
          %v728 = vmul.f32 %v714, %v726
          %v729 = vmul.f32 %v715, %v726
          %v730 = vmul.f32 %v716, %v726
          %v731 = vadd.f32 %v672, %v727
          %v732 = vadd.f32 %v673, %v728
          %v733 = vadd.f32 %v674, %v729
          %v734 = vadd.f32 %v675, %v730
          %v735 = vstv %s535
          %v736 = vmul.f32 %v593, %v735
          %v737 = vmul.f32 %v594, %v735
          %v738 = vmul.f32 %v595, %v735
          %v739 = vmul.f32 %v596, %v735
          %v740 = vstv %s561
          %v741 = vadd.f32 %v736, %v740
          %v742 = vadd.f32 %v737, %v740
          %v743 = vadd.f32 %v738, %v740
          %v744 = vadd.f32 %v739, %v740
          %v745 = vstv %s536
          %v746 = vmul.f32 %v599, %v745
          %v747 = vmul.f32 %v600, %v745
          %v748 = vmul.f32 %v601, %v745
          %v749 = vmul.f32 %v602, %v745
          %v750 = vadd.f32 %v741, %v746
          %v751 = vadd.f32 %v742, %v747
          %v752 = vadd.f32 %v743, %v748
          %v753 = vadd.f32 %v744, %v749
          %v754 = vstv %s537
          %v755 = vmul.f32 %v605, %v754
          %v756 = vmul.f32 %v606, %v754
          %v757 = vmul.f32 %v607, %v754
          %v758 = vmul.f32 %v608, %v754
          %v759 = vadd.f32 %v750, %v755
          %v760 = vadd.f32 %v751, %v756
          %v761 = vadd.f32 %v752, %v757
          %v762 = vadd.f32 %v753, %v758
          %v763 = vstv %s538
          %v764 = vmul.f32 %v611, %v763
          %v765 = vmul.f32 %v612, %v763
          %v766 = vmul.f32 %v613, %v763
          %v767 = vmul.f32 %v614, %v763
          %v768 = vadd.f32 %v759, %v764
          %v769 = vadd.f32 %v760, %v765
          %v770 = vadd.f32 %v761, %v766
          %v771 = vadd.f32 %v762, %v767
          %v772 = vmax.f32 %v768, 0.0
          %v773 = vmax.f32 %v769, 0.0
          %v774 = vmax.f32 %v770, 0.0
          %v775 = vmax.f32 %v771, 0.0
          %v776 = vstv %s569
          %v777 = vmul.f32 %v772, %v776
          %v778 = vmul.f32 %v773, %v776
          %v779 = vmul.f32 %v774, %v776
          %v780 = vmul.f32 %v775, %v776
          %v781 = vadd.f32 %v722, %v777
          %v782 = vadd.f32 %v723, %v778
          %v783 = vadd.f32 %v724, %v779
          %v784 = vadd.f32 %v725, %v780
          %v785 = vstv %s577
          %v786 = vmul.f32 %v772, %v785
          %v787 = vmul.f32 %v773, %v785
          %v788 = vmul.f32 %v774, %v785
          %v789 = vmul.f32 %v775, %v785
          %v790 = vadd.f32 %v731, %v786
          %v791 = vadd.f32 %v732, %v787
          %v792 = vadd.f32 %v733, %v788
          %v793 = vadd.f32 %v734, %v789
          %v794 = vstv %s539
          %v795 = vmul.f32 %v593, %v794
          %v796 = vmul.f32 %v594, %v794
          %v797 = vmul.f32 %v595, %v794
          %v798 = vmul.f32 %v596, %v794
          %v799 = vstv %s562
          %v800 = vadd.f32 %v795, %v799
          %v801 = vadd.f32 %v796, %v799
          %v802 = vadd.f32 %v797, %v799
          %v803 = vadd.f32 %v798, %v799
          %v804 = vstv %s540
          %v805 = vmul.f32 %v599, %v804
          %v806 = vmul.f32 %v600, %v804
          %v807 = vmul.f32 %v601, %v804
          %v808 = vmul.f32 %v602, %v804
          %v809 = vadd.f32 %v800, %v805
          %v810 = vadd.f32 %v801, %v806
          %v811 = vadd.f32 %v802, %v807
          %v812 = vadd.f32 %v803, %v808
          %v813 = vstv %s541
          %v814 = vmul.f32 %v605, %v813
          %v815 = vmul.f32 %v606, %v813
          %v816 = vmul.f32 %v607, %v813
          %v817 = vmul.f32 %v608, %v813
          %v818 = vadd.f32 %v809, %v814
          %v819 = vadd.f32 %v810, %v815
          %v820 = vadd.f32 %v811, %v816
          %v821 = vadd.f32 %v812, %v817
          %v822 = vstv %s542
          %v823 = vmul.f32 %v611, %v822
          %v824 = vmul.f32 %v612, %v822
          %v825 = vmul.f32 %v613, %v822
          %v826 = vmul.f32 %v614, %v822
          %v827 = vadd.f32 %v818, %v823
          %v828 = vadd.f32 %v819, %v824
          %v829 = vadd.f32 %v820, %v825
          %v830 = vadd.f32 %v821, %v826
          %v831 = vmax.f32 %v827, 0.0
          %v832 = vmax.f32 %v828, 0.0
          %v833 = vmax.f32 %v829, 0.0
          %v834 = vmax.f32 %v830, 0.0
          %v835 = vstv %s570
          %v836 = vmul.f32 %v831, %v835
          %v837 = vmul.f32 %v832, %v835
          %v838 = vmul.f32 %v833, %v835
          %v839 = vmul.f32 %v834, %v835
          %v840 = vadd.f32 %v781, %v836
          %v841 = vadd.f32 %v782, %v837
          %v842 = vadd.f32 %v783, %v838
          %v843 = vadd.f32 %v784, %v839
          %v844 = vstv %s578
          %v845 = vmul.f32 %v831, %v844
          %v846 = vmul.f32 %v832, %v844
          %v847 = vmul.f32 %v833, %v844
          %v848 = vmul.f32 %v834, %v844
          %v849 = vadd.f32 %v790, %v845
          %v850 = vadd.f32 %v791, %v846
          %v851 = vadd.f32 %v792, %v847
          %v852 = vadd.f32 %v793, %v848
          %v853 = vstv %s543
          %v854 = vmul.f32 %v593, %v853
          %v855 = vmul.f32 %v594, %v853
          %v856 = vmul.f32 %v595, %v853
          %v857 = vmul.f32 %v596, %v853
          %v858 = vstv %s563
          %v859 = vadd.f32 %v854, %v858
          %v860 = vadd.f32 %v855, %v858
          %v861 = vadd.f32 %v856, %v858
          %v862 = vadd.f32 %v857, %v858
          %v863 = vstv %s544
          %v864 = vmul.f32 %v599, %v863
          %v865 = vmul.f32 %v600, %v863
          %v866 = vmul.f32 %v601, %v863
          %v867 = vmul.f32 %v602, %v863
          %v868 = vadd.f32 %v859, %v864
          %v869 = vadd.f32 %v860, %v865
          %v870 = vadd.f32 %v861, %v866
          %v871 = vadd.f32 %v862, %v867
          %v872 = vstv %s545
          %v873 = vmul.f32 %v605, %v872
          %v874 = vmul.f32 %v606, %v872
          %v875 = vmul.f32 %v607, %v872
          %v876 = vmul.f32 %v608, %v872
          %v877 = vadd.f32 %v868, %v873
          %v878 = vadd.f32 %v869, %v874
          %v879 = vadd.f32 %v870, %v875
          %v880 = vadd.f32 %v871, %v876
          %v881 = vstv %s546
          %v882 = vmul.f32 %v611, %v881
          %v883 = vmul.f32 %v612, %v881
          %v884 = vmul.f32 %v613, %v881
          %v885 = vmul.f32 %v614, %v881
          %v886 = vadd.f32 %v877, %v882
          %v887 = vadd.f32 %v878, %v883
          %v888 = vadd.f32 %v879, %v884
          %v889 = vadd.f32 %v880, %v885
          %v890 = vmax.f32 %v886, 0.0
          %v891 = vmax.f32 %v887, 0.0
          %v892 = vmax.f32 %v888, 0.0
          %v893 = vmax.f32 %v889, 0.0
          %v894 = vstv %s571
          %v895 = vmul.f32 %v890, %v894
          %v896 = vmul.f32 %v891, %v894
          %v897 = vmul.f32 %v892, %v894
          %v898 = vmul.f32 %v893, %v894
          %v899 = vadd.f32 %v840, %v895
          %v900 = vadd.f32 %v841, %v896
          %v901 = vadd.f32 %v842, %v897
          %v902 = vadd.f32 %v843, %v898
          %v903 = vstv %s579
          %v904 = vmul.f32 %v890, %v903
          %v905 = vmul.f32 %v891, %v903
          %v906 = vmul.f32 %v892, %v903
          %v907 = vmul.f32 %v893, %v903
          %v908 = vadd.f32 %v849, %v904
          %v909 = vadd.f32 %v850, %v905
          %v910 = vadd.f32 %v851, %v906
          %v911 = vadd.f32 %v852, %v907
          %v912 = vstv %s547
          %v913 = vmul.f32 %v593, %v912
          %v914 = vmul.f32 %v594, %v912
          %v915 = vmul.f32 %v595, %v912
          %v916 = vmul.f32 %v596, %v912
          %v917 = vstv %s564
          %v918 = vadd.f32 %v913, %v917
          %v919 = vadd.f32 %v914, %v917
          %v920 = vadd.f32 %v915, %v917
          %v921 = vadd.f32 %v916, %v917
          %v922 = vstv %s548
          %v923 = vmul.f32 %v599, %v922
          %v924 = vmul.f32 %v600, %v922
          %v925 = vmul.f32 %v601, %v922
          %v926 = vmul.f32 %v602, %v922
          %v927 = vadd.f32 %v918, %v923
          %v928 = vadd.f32 %v919, %v924
          %v929 = vadd.f32 %v920, %v925
          %v930 = vadd.f32 %v921, %v926
          %v931 = vstv %s549
          %v932 = vmul.f32 %v605, %v931
          %v933 = vmul.f32 %v606, %v931
          %v934 = vmul.f32 %v607, %v931
          %v935 = vmul.f32 %v608, %v931
          %v936 = vadd.f32 %v927, %v932
          %v937 = vadd.f32 %v928, %v933
          %v938 = vadd.f32 %v929, %v934
          %v939 = vadd.f32 %v930, %v935
          %v940 = vstv %s550
          %v941 = vmul.f32 %v611, %v940
          %v942 = vmul.f32 %v612, %v940
          %v943 = vmul.f32 %v613, %v940
          %v944 = vmul.f32 %v614, %v940
          %v945 = vadd.f32 %v936, %v941
          %v946 = vadd.f32 %v937, %v942
          %v947 = vadd.f32 %v938, %v943
          %v948 = vadd.f32 %v939, %v944
          %v949 = vmax.f32 %v945, 0.0
          %v950 = vmax.f32 %v946, 0.0
          %v951 = vmax.f32 %v947, 0.0
          %v952 = vmax.f32 %v948, 0.0
          %v953 = vstv %s572
          %v954 = vmul.f32 %v949, %v953
          %v955 = vmul.f32 %v950, %v953
          %v956 = vmul.f32 %v951, %v953
          %v957 = vmul.f32 %v952, %v953
          %v958 = vadd.f32 %v899, %v954
          %v959 = vadd.f32 %v900, %v955
          %v960 = vadd.f32 %v901, %v956
          %v961 = vadd.f32 %v902, %v957
          %v962 = vstv %s580
          %v963 = vmul.f32 %v949, %v962
          %v964 = vmul.f32 %v950, %v962
          %v965 = vmul.f32 %v951, %v962
          %v966 = vmul.f32 %v952, %v962
          %v967 = vadd.f32 %v908, %v963
          %v968 = vadd.f32 %v909, %v964
          %v969 = vadd.f32 %v910, %v965
          %v970 = vadd.f32 %v911, %v966
          %v971 = vstv %s551
          %v972 = vmul.f32 %v593, %v971
          %v973 = vmul.f32 %v594, %v971
          %v974 = vmul.f32 %v595, %v971
          %v975 = vmul.f32 %v596, %v971
          %v976 = vstv %s565
          %v977 = vadd.f32 %v972, %v976
          %v978 = vadd.f32 %v973, %v976
          %v979 = vadd.f32 %v974, %v976
          %v980 = vadd.f32 %v975, %v976
          %v981 = vstv %s552
          %v982 = vmul.f32 %v599, %v981
          %v983 = vmul.f32 %v600, %v981
          %v984 = vmul.f32 %v601, %v981
          %v985 = vmul.f32 %v602, %v981
          %v986 = vadd.f32 %v977, %v982
          %v987 = vadd.f32 %v978, %v983
          %v988 = vadd.f32 %v979, %v984
          %v989 = vadd.f32 %v980, %v985
          %v990 = vstv %s553
          %v991 = vmul.f32 %v605, %v990
          %v992 = vmul.f32 %v606, %v990
          %v993 = vmul.f32 %v607, %v990
          %v994 = vmul.f32 %v608, %v990
          %v995 = vadd.f32 %v986, %v991
          %v996 = vadd.f32 %v987, %v992
          %v997 = vadd.f32 %v988, %v993
          %v998 = vadd.f32 %v989, %v994
          %v999 = vstv %s554
          %v1000 = vmul.f32 %v611, %v999
          %v1001 = vmul.f32 %v612, %v999
          %v1002 = vmul.f32 %v613, %v999
          %v1003 = vmul.f32 %v614, %v999
          %v1004 = vadd.f32 %v995, %v1000
          %v1005 = vadd.f32 %v996, %v1001
          %v1006 = vadd.f32 %v997, %v1002
          %v1007 = vadd.f32 %v998, %v1003
          %v1008 = vmax.f32 %v1004, 0.0
          %v1009 = vmax.f32 %v1005, 0.0
          %v1010 = vmax.f32 %v1006, 0.0
          %v1011 = vmax.f32 %v1007, 0.0
          %v1012 = vstv %s573
          %v1013 = vmul.f32 %v1008, %v1012
          %v1014 = vmul.f32 %v1009, %v1012
          %v1015 = vmul.f32 %v1010, %v1012
          %v1016 = vmul.f32 %v1011, %v1012
          %v1017 = vadd.f32 %v958, %v1013
          %v1018 = vadd.f32 %v959, %v1014
          %v1019 = vadd.f32 %v960, %v1015
          %v1020 = vadd.f32 %v961, %v1016
          %v1021 = vstv %s581
          %v1022 = vmul.f32 %v1008, %v1021
          %v1023 = vmul.f32 %v1009, %v1021
          %v1024 = vmul.f32 %v1010, %v1021
          %v1025 = vmul.f32 %v1011, %v1021
          %v1026 = vadd.f32 %v967, %v1022
          %v1027 = vadd.f32 %v968, %v1023
          %v1028 = vadd.f32 %v969, %v1024
          %v1029 = vadd.f32 %v970, %v1025
          %v1030 = vstv %s555
          %v1031 = vmul.f32 %v593, %v1030
          %v1032 = vmul.f32 %v594, %v1030
          %v1033 = vmul.f32 %v595, %v1030
          %v1034 = vmul.f32 %v596, %v1030
          %v1035 = vstv %s566
          %v1036 = vadd.f32 %v1031, %v1035
          %v1037 = vadd.f32 %v1032, %v1035
          %v1038 = vadd.f32 %v1033, %v1035
          %v1039 = vadd.f32 %v1034, %v1035
          %v1040 = vstv %s556
          %v1041 = vmul.f32 %v599, %v1040
          %v1042 = vmul.f32 %v600, %v1040
          %v1043 = vmul.f32 %v601, %v1040
          %v1044 = vmul.f32 %v602, %v1040
          %v1045 = vadd.f32 %v1036, %v1041
          %v1046 = vadd.f32 %v1037, %v1042
          %v1047 = vadd.f32 %v1038, %v1043
          %v1048 = vadd.f32 %v1039, %v1044
          %v1049 = vstv %s557
          %v1050 = vmul.f32 %v605, %v1049
          %v1051 = vmul.f32 %v606, %v1049
          %v1052 = vmul.f32 %v607, %v1049
          %v1053 = vmul.f32 %v608, %v1049
          %v1054 = vadd.f32 %v1045, %v1050
          %v1055 = vadd.f32 %v1046, %v1051
          %v1056 = vadd.f32 %v1047, %v1052
          %v1057 = vadd.f32 %v1048, %v1053
          %v1058 = vstv %s558
          %v1059 = vmul.f32 %v611, %v1058
          %v1060 = vmul.f32 %v612, %v1058
          %v1061 = vmul.f32 %v613, %v1058
          %v1062 = vmul.f32 %v614, %v1058
          %v1063 = vadd.f32 %v1054, %v1059
          %v1064 = vadd.f32 %v1055, %v1060
          %v1065 = vadd.f32 %v1056, %v1061
          %v1066 = vadd.f32 %v1057, %v1062
          %v1067 = vmax.f32 %v1063, 0.0
          %v1068 = vmax.f32 %v1064, 0.0
          %v1069 = vmax.f32 %v1065, 0.0
          %v1070 = vmax.f32 %v1066, 0.0
          %v1071 = vstv %s574
          %v1072 = vmul.f32 %v1067, %v1071
          %v1073 = vmul.f32 %v1068, %v1071
          %v1074 = vmul.f32 %v1069, %v1071
          %v1075 = vmul.f32 %v1070, %v1071
          %v1076 = vadd.f32 %v1017, %v1072
          %v1077 = vadd.f32 %v1018, %v1073
          %v1078 = vadd.f32 %v1019, %v1074
          %v1079 = vadd.f32 %v1020, %v1075
          %v1080 = vstv %s582
          %v1081 = vmul.f32 %v1067, %v1080
          %v1082 = vmul.f32 %v1068, %v1080
          %v1083 = vmul.f32 %v1069, %v1080
          %v1084 = vmul.f32 %v1070, %v1080
          %v1085 = vadd.f32 %v1026, %v1081
          %v1086 = vadd.f32 %v1027, %v1082
          %v1087 = vadd.f32 %v1028, %v1083
          %v1088 = vadd.f32 %v1029, %v1084
          %s1089 = scalar_lea.vmem %s516, %s591 [#allocation10]
          %1090 = vst [vmem:[%s1089] sm:$0xff] %v1076
          %1091 = vst [vmem:[%s1089 + $0x8] sm:$0xff] %v1077
          %1092 = vst [vmem:[%s1089 + $0x10] sm:$0xff] %v1078
          %1093 = vst [vmem:[%s1089 + $0x18] sm:$0xff] %v1079
          %s1094 = scalar_lea.vmem %s516, %s597 [#allocation10]
          %1095 = vst [vmem:[%s1094] sm:$0xff] %v1085
          %1096 = vst [vmem:[%s1094 + $0x8] sm:$0xff] %v1086
          %1097 = vst [vmem:[%s1094 + $0x10] sm:$0xff] %v1087
          %1098 = vst [vmem:[%s1094 + $0x18] sm:$0xff] %v1088
        $region113: #{tpu_custom_call.1} parent=87 // loop_footer
          %s590 = sadd.s32 1, %s586
        $region114: #{tpu_custom_call.1} parent=87 // loop_footer_branch
          %585 = sbr.rel target = $region110
        $region115: #{tpu_custom_call.1} parent=87 // loop_exit
          _
        %s1099 = sand.u32 %s137, 1
        %s1100 = sand.u32 %s137, 1
        %s1101 = smul.addr %s1100, 128
        %s1102 = scalar_lea.vmem [#allocation10], %s1101
        // Predicated region
        $region116: #{tpu_custom_call.1} parent=87 // pred_check
          %p1103 = pneg %p147
        $region117: #{tpu_custom_call.1} parent=87 // pred_check_branch
          %1105 = sbr.rel (%p1103) target = $region119
        $region118: #{tpu_custom_call.1} parent=87 // pred_region
          %s1106 = smul.u32 8, %s19
          %s1107 = ssub.s32 9, %s1106
          %p1108 = scmp.lt.s32.totalorder %s1107, 8
          %s1109 = scalar_select %p1108, %s1107, 8
          %s1110 = smul.u32 256, %s1109
          %p1111 = scmp.ne.s32.totalorder 0, %s1110
          %s1112 = smul.addr %s1106, 8
          %s1113 = scalar_lea.vmem %s5, %s1112
          // Predicated region
          $region120: #{tpu_custom_call.1} parent=118 // pred_check
            %p1114 = pneg %p1111
          $region121: #{tpu_custom_call.1} parent=118 // pred_check_branch
            %1116 = sbr.rel (%p1114) target = $region123
          $region122: #{tpu_custom_call.1} parent=118 // pred_region
            // Predicated region
            $region124: #{tpu_custom_call.1} parent=122 // pred_check
              _
            $region125: #{tpu_custom_call.1} parent=122 // pred_check_branch
              %1118 = sbr.rel (0) target = $region127
            $region126: #{tpu_custom_call.1} parent=122 // pred_region
              // Predicated region
              $region146: #{tpu_custom_call.1} parent=126 // pred_check
                _
              $region147: #{tpu_custom_call.1} parent=126 // pred_check_branch
                %1200 = sbr.rel (0) target = $region149
              $region148: #{tpu_custom_call.1} parent=126 // pred_region
                %s1201 = sshrl.u32 %s1109, 3
                // While loop
                $region150: #{tpu_custom_call.1} parent=148 // loop_pre_header
                  _
                $region151: #{tpu_custom_call.1} parent=148 // loop_header
                  %s1203 = sphi 0, %s1205
                  %p1204 = scmp.ge.s32.totalorder %s1203, %s1201
                  %s1208 = sphi 0, %s1245
                  %s1209 = sphi %s1102, %s1248
                  %s1210 = sphi %s1113, %s1249
                $region152: #{tpu_custom_call.1} parent=148 // loop_header_branch
                  %1207 = sbr.rel (%p1204) target = $region156
                $region153: #{tpu_custom_call.1} parent=148 // loop_body
                  %v1211 = vld [vmem:[%s1209] sm:$0xff]
                  %1212 = vst [vmem:[%s1210] sm:$0xff] %v1211
                  %v1213 = vld [vmem:[%s1209 + $0x8] sm:$0xff]
                  %1214 = vst [vmem:[%s1210 + $0x8] sm:$0xff] %v1213
                  %v1215 = vld [vmem:[%s1209 + $0x10] sm:$0xff]
                  %1216 = vst [vmem:[%s1210 + $0x10] sm:$0xff] %v1215
                  %v1217 = vld [vmem:[%s1209 + $0x18] sm:$0xff]
                  %1218 = vst [vmem:[%s1210 + $0x18] sm:$0xff] %v1217
                  %v1219 = vld [vmem:[%s1209 + $0x20] sm:$0xff]
                  %1220 = vst [vmem:[%s1210 + $0x20] sm:$0xff] %v1219
                  %v1221 = vld [vmem:[%s1209 + $0x28] sm:$0xff]
                  %1222 = vst [vmem:[%s1210 + $0x28] sm:$0xff] %v1221
                  %v1223 = vld [vmem:[%s1209 + $0x30] sm:$0xff]
                  %1224 = vst [vmem:[%s1210 + $0x30] sm:$0xff] %v1223
                  %v1225 = vld [vmem:[%s1209 + $0x38] sm:$0xff]
                  %1226 = vst [vmem:[%s1210 + $0x38] sm:$0xff] %v1225
                  %v1227 = vld [vmem:[%s1209 + $0x40] sm:$0xff]
                  %1228 = vst [vmem:[%s1210 + $0x48] sm:$0xff] %v1227
                  %v1229 = vld [vmem:[%s1209 + $0x48] sm:$0xff]
                  %1230 = vst [vmem:[%s1210 + $0x50] sm:$0xff] %v1229
                  %v1231 = vld [vmem:[%s1209 + $0x50] sm:$0xff]
                  %1232 = vst [vmem:[%s1210 + $0x58] sm:$0xff] %v1231
                  %v1233 = vld [vmem:[%s1209 + $0x58] sm:$0xff]
                  %1234 = vst [vmem:[%s1210 + $0x60] sm:$0xff] %v1233
                  %v1235 = vld [vmem:[%s1209 + $0x60] sm:$0xff]
                  %1236 = vst [vmem:[%s1210 + $0x68] sm:$0xff] %v1235
                  %v1237 = vld [vmem:[%s1209 + $0x68] sm:$0xff]
                  %1238 = vst [vmem:[%s1210 + $0x70] sm:$0xff] %v1237
                  %v1239 = vld [vmem:[%s1209 + $0x70] sm:$0xff]
                  %1240 = vst [vmem:[%s1210 + $0x78] sm:$0xff] %v1239
                  %v1241 = vld [vmem:[%s1209 + $0x78] sm:$0xff]
                  %1242 = vst [vmem:[%s1210 + $0x80] sm:$0xff] %v1241
                  %s1243 = sadd.s32 1, %s1208
                  %p1244 = scmp.ge.s32.totalorder %s1243, %s1201
                  %s1245 = scalar_select %p1244, 0, %s1243
                  %s1246 = smul.u32 %s1245, 64
                  %s1247 = smul.u32 %s1245, 64
                  %s1248 = scalar_lea.vmem %s1102, %s1246 [#allocation10]
                  %s1249 = scalar_lea.vmem %s1113, %s1247
                $region154: #{tpu_custom_call.1} parent=148 // loop_footer
                  %s1205 = sadd.s32 %s1203, 1
                $region155: #{tpu_custom_call.1} parent=148 // loop_footer_branch
                  %1202 = sbr.rel target = $region151
                $region156: #{tpu_custom_call.1} parent=148 // loop_exit
                  _
                %s1250 = sshrl.u32 %s1109, 3
                %s1251 = sand.u32 %s1109, 7
                %s1252 = smul.u32 %s1250, 8
                %s1253 = smul.u32 8, %s1252
                %s1254 = scalar_lea.vmem %s1102, %s1253 [#allocation10]
                %s1255 = smul.u32 8, %s1252
                %s1256 = scalar_lea.vmem %s1113, %s1255
                // While loop
                $region157: #{tpu_custom_call.1} parent=148 // loop_pre_header
                  _
                $region158: #{tpu_custom_call.1} parent=148 // loop_header
                  %s1258 = sphi 0, %s1260
                  %p1259 = scmp.ge.s32.totalorder %s1258, %s1251
                  %s1263 = sphi 0, %s1272
                  %s1264 = sphi %s1254, %s1275
                  %s1265 = sphi %s1256, %s1276
                $region159: #{tpu_custom_call.1} parent=148 // loop_header_branch
                  %1262 = sbr.rel (%p1259) target = $region163
                $region160: #{tpu_custom_call.1} parent=148 // loop_body
                  %v1266 = vld [vmem:[%s1264] sm:$0xff]
                  %1267 = vst [vmem:[%s1265] sm:$0xff] %v1266
                  %v1268 = vld [vmem:[%s1264 + $0x40] sm:$0xff]
                  %1269 = vst [vmem:[%s1265 + $0x48] sm:$0xff] %v1268
                  %s1270 = sadd.s32 1, %s1263
                  %p1271 = scmp.ge.s32.totalorder %s1270, %s1251
                  %s1272 = scalar_select %p1271, 0, %s1270
                  %s1273 = smul.u32 %s1272, 8
                  %s1274 = smul.u32 %s1272, 8
                  %s1275 = scalar_lea.vmem %s1254, %s1273 [#allocation10]
                  %s1276 = scalar_lea.vmem %s1256, %s1274
                $region161: #{tpu_custom_call.1} parent=148 // loop_footer
                  %s1260 = sadd.s32 %s1258, 1
                $region162: #{tpu_custom_call.1} parent=148 // loop_footer_branch
                  %1257 = sbr.rel target = $region158
                $region163: #{tpu_custom_call.1} parent=148 // loop_exit
                  _
              $region149: #{tpu_custom_call.1} parent=126 // pred_fallthru
                _
              // Predicated region
              $region164: #{tpu_custom_call.1} parent=126 // pred_check
                _
              $region165: #{tpu_custom_call.1} parent=126 // pred_check_branch
                %1278 = sbr.rel target = $region167
              $region166: #{tpu_custom_call.1} parent=126 // pred_region
                _
              $region167: #{tpu_custom_call.1} parent=126 // pred_fallthru
                _
            $region127: #{tpu_custom_call.1} parent=122 // pred_fallthru
              _
            // Predicated region
            $region128: #{tpu_custom_call.1} parent=122 // pred_check
              _
            $region129: #{tpu_custom_call.1} parent=122 // pred_check_branch
              %1120 = sbr.rel target = $region131
            $region130: #{tpu_custom_call.1} parent=122 // pred_region
              %s1122 = ssub.s32 256, 1
              %s1123 = sshrl.u32 %s1109, 3
              // While loop
              $region132: #{tpu_custom_call.1} parent=130 // loop_pre_header
                _
              $region133: #{tpu_custom_call.1} parent=130 // loop_header
                %s1125 = sphi 0, %s1127
                %p1126 = scmp.ge.s32.totalorder %s1125, %s1123
                %s1130 = sphi 0, %s1167
                %s1131 = sphi %s1102, %s1170
                %s1132 = sphi %s1113, %s1171
              $region134: #{tpu_custom_call.1} parent=130 // loop_header_branch
                %1129 = sbr.rel (%p1126) target = $region138
              $region135: #{tpu_custom_call.1} parent=130 // loop_body
                %v1133 = vld [vmem:[%s1131] sm:%s1122]
                %1134 = vst [vmem:[%s1132] sm:%s1122] %v1133
                %v1135 = vld [vmem:[%s1131 + $0x8] sm:%s1122]
                %1136 = vst [vmem:[%s1132 + $0x8] sm:%s1122] %v1135
                %v1137 = vld [vmem:[%s1131 + $0x10] sm:%s1122]
                %1138 = vst [vmem:[%s1132 + $0x10] sm:%s1122] %v1137
                %v1139 = vld [vmem:[%s1131 + $0x18] sm:%s1122]
                %1140 = vst [vmem:[%s1132 + $0x18] sm:%s1122] %v1139
                %v1141 = vld [vmem:[%s1131 + $0x20] sm:%s1122]
                %1142 = vst [vmem:[%s1132 + $0x20] sm:%s1122] %v1141
                %v1143 = vld [vmem:[%s1131 + $0x28] sm:%s1122]
                %1144 = vst [vmem:[%s1132 + $0x28] sm:%s1122] %v1143
                %v1145 = vld [vmem:[%s1131 + $0x30] sm:%s1122]
                %1146 = vst [vmem:[%s1132 + $0x30] sm:%s1122] %v1145
                %v1147 = vld [vmem:[%s1131 + $0x38] sm:%s1122]
                %1148 = vst [vmem:[%s1132 + $0x38] sm:%s1122] %v1147
                %v1149 = vld [vmem:[%s1131 + $0x40] sm:%s1122]
                %1150 = vst [vmem:[%s1132 + $0x48] sm:%s1122] %v1149
                %v1151 = vld [vmem:[%s1131 + $0x48] sm:%s1122]
                %1152 = vst [vmem:[%s1132 + $0x50] sm:%s1122] %v1151
                %v1153 = vld [vmem:[%s1131 + $0x50] sm:%s1122]
                %1154 = vst [vmem:[%s1132 + $0x58] sm:%s1122] %v1153
                %v1155 = vld [vmem:[%s1131 + $0x58] sm:%s1122]
                %1156 = vst [vmem:[%s1132 + $0x60] sm:%s1122] %v1155
                %v1157 = vld [vmem:[%s1131 + $0x60] sm:%s1122]
                %1158 = vst [vmem:[%s1132 + $0x68] sm:%s1122] %v1157
                %v1159 = vld [vmem:[%s1131 + $0x68] sm:%s1122]
                %1160 = vst [vmem:[%s1132 + $0x70] sm:%s1122] %v1159
                %v1161 = vld [vmem:[%s1131 + $0x70] sm:%s1122]
                %1162 = vst [vmem:[%s1132 + $0x78] sm:%s1122] %v1161
                %v1163 = vld [vmem:[%s1131 + $0x78] sm:%s1122]
                %1164 = vst [vmem:[%s1132 + $0x80] sm:%s1122] %v1163
                %s1165 = sadd.s32 1, %s1130
                %p1166 = scmp.ge.s32.totalorder %s1165, %s1123
                %s1167 = scalar_select %p1166, 0, %s1165
                %s1168 = smul.u32 %s1167, 64
                %s1169 = smul.u32 %s1167, 64
                %s1170 = scalar_lea.vmem %s1102, %s1168 [#allocation10]
                %s1171 = scalar_lea.vmem %s1113, %s1169
              $region136: #{tpu_custom_call.1} parent=130 // loop_footer
                %s1127 = sadd.s32 %s1125, 1
              $region137: #{tpu_custom_call.1} parent=130 // loop_footer_branch
                %1124 = sbr.rel target = $region133
              $region138: #{tpu_custom_call.1} parent=130 // loop_exit
                _
              %s1172 = sshrl.u32 %s1109, 3
              %s1173 = sand.u32 %s1109, 7
              %s1174 = smul.u32 %s1172, 8
              %s1175 = smul.u32 8, %s1174
              %s1176 = scalar_lea.vmem %s1102, %s1175 [#allocation10]
              %s1177 = smul.u32 8, %s1174
              %s1178 = scalar_lea.vmem %s1113, %s1177
              // While loop
              $region139: #{tpu_custom_call.1} parent=130 // loop_pre_header
                _
              $region140: #{tpu_custom_call.1} parent=130 // loop_header
                %s1180 = sphi 0, %s1182
                %p1181 = scmp.ge.s32.totalorder %s1180, %s1173
                %s1185 = sphi 0, %s1194
                %s1186 = sphi %s1176, %s1197
                %s1187 = sphi %s1178, %s1198
              $region141: #{tpu_custom_call.1} parent=130 // loop_header_branch
                %1184 = sbr.rel (%p1181) target = $region145
              $region142: #{tpu_custom_call.1} parent=130 // loop_body
                %v1188 = vld [vmem:[%s1186] sm:%s1122]
                %1189 = vst [vmem:[%s1187] sm:%s1122] %v1188
                %v1190 = vld [vmem:[%s1186 + $0x40] sm:%s1122]
                %1191 = vst [vmem:[%s1187 + $0x48] sm:%s1122] %v1190
                %s1192 = sadd.s32 1, %s1185
                %p1193 = scmp.ge.s32.totalorder %s1192, %s1173
                %s1194 = scalar_select %p1193, 0, %s1192
                %s1195 = smul.u32 %s1194, 8
                %s1196 = smul.u32 %s1194, 8
                %s1197 = scalar_lea.vmem %s1176, %s1195 [#allocation10]
                %s1198 = scalar_lea.vmem %s1178, %s1196
              $region143: #{tpu_custom_call.1} parent=130 // loop_footer
                %s1182 = sadd.s32 %s1180, 1
              $region144: #{tpu_custom_call.1} parent=130 // loop_footer_branch
                %1179 = sbr.rel target = $region140
              $region145: #{tpu_custom_call.1} parent=130 // loop_exit
                _
            $region131: #{tpu_custom_call.1} parent=122 // pred_fallthru
              _
          $region123: #{tpu_custom_call.1} parent=118 // pred_fallthru
            _
          %1279 = vnop
        $region119: #{tpu_custom_call.1} parent=87 // pred_fallthru
          _
      $region88: #{tpu_custom_call.1} parent=5 // pred_fallthru
        _
      %p1280 = scmp.le.s32.totalorder 2, %s14
      // Predicated region
      $region168: #{tpu_custom_call.1} parent=5 // pred_check
        %p1281 = pneg %p1280
      $region169: #{tpu_custom_call.1} parent=5 // pred_check_branch
        %1283 = sbr.rel (%p1281) target = $region171
      $region170: #{tpu_custom_call.1} parent=5 // pred_region
        %s1284 = ssub.s32 %s14, 2
        // Predicated region
        $region172: #{tpu_custom_call.1} parent=170 // pred_check
          %p1285 = pneg %p153
        $region173: #{tpu_custom_call.1} parent=170 // pred_check_branch
          %1287 = sbr.rel (%p1285) target = $region175
        $region174: #{tpu_custom_call.1} parent=170 // pred_region
          %s1288 = sand.u32 %s138, 1
          %s1289 = sand.u32 %s138, 1
          %s1290 = smul.addr %s1289, 128
          %s1291 = scalar_lea.vmem [#allocation10], %s1290
        $region175: #{tpu_custom_call.1} parent=170 // pred_fallthru
          _
      $region171: #{tpu_custom_call.1} parent=5 // pred_fallthru
        _
    $region6: #{tpu_custom_call.1} parent=1 // loop_footer
      %s18 = sadd.s32 1, %s14
    $region7: #{tpu_custom_call.1} parent=1 // loop_footer_branch
      %13 = sbr.rel target = $region3
    $region8: #{tpu_custom_call.1} parent=1 // loop_exit
      _
    %1292 = vsyncpa [#allocation4], 1
    %s1293 = scalar_lea.sflag [#allocation4], 1
    %1294 = vsyncpa %s1293, 1
    %1295 = vsyncpa [#allocation6], 1
    %1296 = vsyncpa [#allocation9], 1

</llo_original>
